<compile_context>
chip_gen: v7x
topology: tpu7x:2x2x1
jax: 0.10.0
libtpu: 0.0.40
codegen_flags: <defaults>
</compile_context>

<pallas_src>
import jax
import jax.numpy as jnp
from jax import lax
from jax.experimental import pallas as pl
from jax.experimental.pallas import tpu as pltpu

# ---- hyperparameters (mirror CNN1dLCmodel.__init__ defaults, small sizes) ----
NX, NY, NOBS, HIDDEN = 4, 2, 16, 32
NKERNEL = (10, 5)
KSIZE = (3, 3)
STRIDE = (2, 1)
RHO, NGRID = 8, 8            # sequence length rho, number of grid cells (batch)


def cal_conv_size(lin, k, s):
    return (lin - k) // s + 1


L1 = cal_conv_size(NOBS, KSIZE[0], STRIDE[0])    # 7
L2 = cal_conv_size(L1, KSIZE[1], STRIDE[1])      # 5
NCNNOUT = L2 * NKERNEL[1]                        # 25  (== self.Ncnnout)
NF = NCNNOUT + NX                                # 29  (== Nf)


# ------------------------------ fused kernel ----------------------------------
def fused_kernel(z_ref, x_ref, w1f_ref, b1t_ref, w2f_ref, b2t_ref,
                 winx_ref, winz_ref, bin_ref, wih_ref, whh_ref, bsum_ref,
                 wout_ref, bout_ref, out_ref):
    g = z_ref.shape[0]                    # padded ngrid
    rho = x_ref.shape[0] // g             # static
    H = bin_ref.shape[1]

    # ---- CNN: conv1 + ReLU, conv2 + ReLU as two dense matmuls -----------------
    z = z_ref[...]                                                    # (g, NOBS)
    h1 = jnp.maximum(
        jnp.dot(z, w1f_ref[...], preferred_element_type=jnp.float32)
        + b1t_ref[...], 0.0)                                          # (g, L1*NK1)
    z0 = jnp.maximum(
        jnp.dot(h1, w2f_ref[...], preferred_element_type=jnp.float32)
        + b2t_ref[...], 0.0)                                          # (g, NCNNOUT)

    # ---- time-invariant part of linearIn (hoisted out of the time loop) -------
    zfeat = (jnp.dot(z0, winz_ref[...], preferred_element_type=jnp.float32)
             + bin_ref[...])                                          # (g, H)

    # ---- time-varying linearIn part + ReLU + input->gate matmul, all steps ----
    xp = jnp.dot(x_ref[...], winx_ref[...],
                 preferred_element_type=jnp.float32)                  # (rho*g, H)
    zt = jnp.concatenate([zfeat] * rho, axis=0)                       # (rho*g, H)
    x0_all = jnp.maximum(xp + zt, 0.0)
    gi_all = (jnp.dot(x0_all, wih_ref[...],
                      preferred_element_type=jnp.float32)
              + bsum_ref[...])                                        # (rho*g, 4H)

    # ---- sequential LSTM: only the recurrent matmul is on the per-step path ---
    whh = whh_ref[...]                                                # (H, 4H)
    h = jnp.zeros((g, H), jnp.float32)
    c = jnp.zeros((g, H), jnp.float32)
    hs = []
    for t in range(rho):                  # fully unrolled (rho=8, static)
        gates = gi_all[t * g:(t + 1) * g, :] + jnp.dot(
            h, whh, preferred_element_type=jnp.float32)               # (g, 4H)
        # cuDNN / PyTorch gate order: i, f, g, o ; sigmoid via single tanh.
        i = 0.5 * (jnp.tanh(0.5 * gates[:, 0 * H:1 * H]) + 1.0)
        f = 0.5 * (jnp.tanh(0.5 * gates[:, 1 * H:2 * H]) + 1.0)
        gg = jnp.tanh(gates[:, 2 * H:3 * H])
        o = 0.5 * (jnp.tanh(0.5 * gates[:, 3 * H:4 * H]) + 1.0)
        c = f * c + i * gg
        h = o * jnp.tanh(c)
        hs.append(h)

    # ---- linearOut for all steps + single writeback ----------------------------
    hall = jnp.concatenate(hs, axis=0)                                # (rho*g, H)
    out_ref[...] = (jnp.dot(hall, wout_ref[...],
                            preferred_element_type=jnp.float32)
                    + bout_ref[...])                                  # (rho*g, NY)


# ------------------------------- wrapper --------------------------------------
def _prep_weights(p):
    """Layout-only weight prep (done once / folded by jit)."""
    NK1, NK2 = NKERNEL
    K1, K2 = KSIZE

    # conv1 as dense (NOBS, L1*NK1) "unrolled conv" matrix; col = l*NK1 + c.
    w1 = p["w1"].reshape(NK1, K1)                                     # w1[c, k]
    w1f = jnp.zeros((NOBS, L1 * NK1), jnp.float32)
    for l in range(L1):
        w1f = w1f.at[l * STRIDE[0]:l * STRIDE[0] + K1,
                     l * NK1:(l + 1) * NK1].set(jnp.transpose(w1))
    b1t = jnp.tile(p["b1"], (L1,)).reshape(1, L1 * NK1)

    # conv2 as dense (L1*NK1, L2*NK2); row = l1*NK1 + ic, col = l2*NK2 + oc.
    w2m = jnp.transpose(p["w2"], (2, 1, 0))                           # (K2, NK1, NK2)
    w2f = jnp.zeros((L1 * NK1, L2 * NK2), jnp.float32)
    for l2 in range(L2):
        for k in range(K2):
            l1 = l2 + k
            w2f = w2f.at[l1 * NK1:(l1 + 1) * NK1,
                         l2 * NK2:(l2 + 1) * NK2].set(w2m[k])
    b2t = jnp.tile(p["b2"], (L2,)).reshape(1, L2 * NK2)

    # linearIn split into x-part and z0-part; z0-part columns reordered to the
    # kernel's (l, oc) layout (torch flatten order is oc*L2 + l).
    winx = jnp.transpose(p["win"][:, :NX])                            # (NX, H)
    winz = jnp.transpose(
        p["win"][:, NX:].reshape(HIDDEN, NK2, L2), (2, 1, 0)
    ).reshape(L2 * NK2, HIDDEN)                                       # (NCNNOUT, H)
    binr = p["bin"].reshape(1, HIDDEN)

    wiht = jnp.transpose(p["wih"])                                    # (H, 4H)
    whht = jnp.transpose(p["whh"])                                    # (H, 4H)
    bsum = (p["bih"] + p["bhh"]).reshape(1, 4 * HIDDEN)
    woutt = jnp.transpose(p["wout"])                                  # (H, NY)
    boutr = p["bout"].reshape(1, NY)
    return (w1f, b1t, w2f, b2t, winx, winz, binr, wiht, whht, bsum, woutt, boutr)


def cnn1d_lc_forward(x, z, p):
    """Pallas forward:  x (rho, ngrid, nx), z (ngrid, nobs) -> (rho, ngrid, ny)."""
    rho, G, _ = x.shape
    Gp = ((G + 7) // 8) * 8                       # pad batch to full sublanes
    if Gp != G:
        x = jnp.pad(x, ((0, 0), (0, Gp - G), (0, 0)))
        z = jnp.pad(z, ((0, Gp - G), (0, 0)))
    xf = x.reshape(rho * Gp, NX)                  # contiguous, free reshape

    weights = _prep_weights(p)
    vmem = pl.BlockSpec(memory_space=pltpu.MemorySpace.VMEM)
    out = pl.pallas_call(
        fused_kernel,
        out_shape=jax.ShapeDtypeStruct((rho * Gp, NY), jnp.float32),
        in_specs=[vmem] * (2 + len(weights)),
        out_specs=vmem,
    )(z, xf, *weights)
    return out.reshape(rho, Gp, NY)[:, :G, :]


# ---------------------------- pure-JAX reference -------------------------------
def reference_forward(x, z, p):
    zin = z[:, None, :]                                               # (G, 1, NOBS)
    h1 = lax.conv_general_dilated(zin, p["w1"], (STRIDE[0],), "VALID",
                                  dimension_numbers=("NCH", "OIH", "NCH"))
    h1 = jax.nn.relu(h1 + p["b1"][None, :, None])
    h2 = lax.conv_general_dilated(h1, p["w2"], (STRIDE[1],), "VALID",
                                  dimension_numbers=("NCH", "OIH", "NCH"))
    h2 = jax.nn.relu(h2 + p["b2"][None, :, None])
    z0 = h2.reshape(z.shape[0], NCNNOUT)
    rho, G = x.shape[0], z.shape[0]
    xz = jnp.concatenate([x, jnp.broadcast_to(z0[None], (rho, G, NCNNOUT))], axis=2)
    x0 = jax.nn.relu(xz @ p["win"].T + p["bin"])

    def step(carry, xt):
        h, c = carry
        gates = xt @ p["wih"].T + p["bih"] + h @ p["whh"].T + p["bhh"]
        i, f, g, o = jnp.split(gates, 4, axis=-1)
        c = jax.nn.sigmoid(f) * c + jax.nn.sigmoid(i) * jnp.tanh(g)
        h = jax.nn.sigmoid(o) * jnp.tanh(c)
        return (h, c), h

    h0 = jnp.zeros((G, HIDDEN), jnp.float32)
    c0 = jnp.zeros((G, HIDDEN), jnp.float32)
    _, hs = lax.scan(step, (h0, c0), x0)
    return hs @ p["wout"].T + p["bout"]


# ----------------------------------- main ---------------------------------------
def init_params(key):
    ks = jax.random.split(key, 10)
    s = 0.1
    return {
        "w1": s * jax.random.normal(ks[0], (NKERNEL[0], 1, KSIZE[0]), jnp.float32),
        "b1": s * jax.random.normal(ks[1], (NKERNEL[0],), jnp.float32),
        "w2": s * jax.random.normal(ks[2], (NKERNEL[1], NKERNEL[0], KSIZE[1]), jnp.float32),
        "b2": s * jax.random.normal(ks[3], (NKERNEL[1],), jnp.float32),
        "win": s * jax.random.normal(ks[4], (HIDDEN, NF), jnp.float32),
        "bin": s * jax.random.normal(ks[5], (HIDDEN,), jnp.float32),
        "wih": s * jax.random.normal(ks[6], (4 * HIDDEN, HIDDEN), jnp.float32),
        "whh": s * jax.random.normal(ks[7], (4 * HIDDEN, HIDDEN), jnp.float32),
        "bih": s * jax.random.normal(ks[8], (4 * HIDDEN,), jnp.float32),
        "bhh": jnp.zeros((4 * HIDDEN,), jnp.float32),
        "wout": s * jax.random.normal(ks[9], (NY, HIDDEN), jnp.float32),
        "bout": jnp.zeros((NY,), jnp.float32),
    }


if __name__ == "__main__":
    key = jax.random.PRNGKey(0)
    kx, kz, kp = jax.random.split(key, 3)
    x = jax.random.normal(kx, (RHO, NGRID, NX), jnp.float32)   # (rho, ngrid, nx)
    z = jax.random.normal(kz, (NGRID, NOBS), jnp.float32)      # (ngrid, nobs)
    params = init_params(kp)

    fwd = jax.jit(cnn1d_lc_forward)
    out = jax.block_until_ready(fwd(x, z, params))
    assert out.shape == (RHO, NGRID, NY), out.shape

    ref = reference_forward(x, z, params)
    assert jnp.allclose(out, ref, atol=1e-3, rtol=1e-3), float(
        jnp.max(jnp.abs(out - ref)))

    print("KERNEL_OK")
</pallas_src>

<mosaic_0001>
module attributes {stable_mosaic.version = 11 : i64} {
  func.func @fused_kernel(%arg0: memref<8x16xf32, #tpu.memory_space<vmem>>, %arg1: memref<64x4xf32, #tpu.memory_space<vmem>>, %arg2: memref<16x70xf32, #tpu.memory_space<vmem>>, %arg3: memref<1x70xf32, #tpu.memory_space<vmem>>, %arg4: memref<70x25xf32, #tpu.memory_space<vmem>>, %arg5: memref<1x25xf32, #tpu.memory_space<vmem>>, %arg6: memref<4x32xf32, #tpu.memory_space<vmem>>, %arg7: memref<25x32xf32, #tpu.memory_space<vmem>>, %arg8: memref<1x32xf32, #tpu.memory_space<vmem>>, %arg9: memref<32x128xf32, #tpu.memory_space<vmem>>, %arg10: memref<32x128xf32, #tpu.memory_space<vmem>>, %arg11: memref<1x128xf32, #tpu.memory_space<vmem>>, %arg12: memref<32x2xf32, #tpu.memory_space<vmem>>, %arg13: memref<1x2xf32, #tpu.memory_space<vmem>>, %arg14: memref<64x2xf32, #tpu.memory_space<vmem>>) attributes {dimension_semantics = [], scalar_prefetch = 0 : i64, scratch_operands = 0 : i64, tpu.core_type = #tpu.core_type<tc>} {
    %c0 = arith.constant 0 : index
    %c0_0 = arith.constant 0 : index
    %0 = vector.load %arg0[%c0, %c0_0] : memref<8x16xf32, #tpu.memory_space<vmem>>, vector<8x16xf32>
    %c0_1 = arith.constant 0 : index
    %c0_2 = arith.constant 0 : index
    %1 = vector.load %arg2[%c0_1, %c0_2] : memref<16x70xf32, #tpu.memory_space<vmem>>, vector<16x70xf32>
    %cst = arith.constant dense<0.000000e+00> : vector<8x70xf32>
    %2 = tpu.matmul %0, %1, %cst {dimension_numbers = #tpu.dot_dimension_numbers<[1], [0], [0], [1], [0, 0, 1, 1], [], []>} : vector<8x16xf32>, vector<16x70xf32>, vector<8x70xf32> -> vector<8x70xf32>
    %c0_3 = arith.constant 0 : index
    %c0_4 = arith.constant 0 : index
    %3 = vector.load %arg3[%c0_3, %c0_4] : memref<1x70xf32, #tpu.memory_space<vmem>>, vector<1x70xf32>
    %4 = vector.broadcast %3 : vector<1x70xf32> to vector<8x70xf32>
    %5 = arith.addf %2, %4 : vector<8x70xf32>
    %cst_5 = arith.constant 0.000000e+00 : f32
    %6 = vector.broadcast %cst_5 : f32 to vector<8x70xf32>
    %7 = arith.maximumf %5, %6 : vector<8x70xf32>
    %c0_6 = arith.constant 0 : index
    %c0_7 = arith.constant 0 : index
    %8 = vector.load %arg4[%c0_6, %c0_7] : memref<70x25xf32, #tpu.memory_space<vmem>>, vector<70x25xf32>
    %cst_8 = arith.constant dense<0.000000e+00> : vector<8x25xf32>
    %9 = tpu.matmul %7, %8, %cst_8 {dimension_numbers = #tpu.dot_dimension_numbers<[1], [0], [0], [1], [0, 0, 1, 1], [], []>} : vector<8x70xf32>, vector<70x25xf32>, vector<8x25xf32> -> vector<8x25xf32>
    %c0_9 = arith.constant 0 : index
    %c0_10 = arith.constant 0 : index
    %10 = vector.load %arg5[%c0_9, %c0_10] : memref<1x25xf32, #tpu.memory_space<vmem>>, vector<1x25xf32>
    %11 = vector.broadcast %10 : vector<1x25xf32> to vector<8x25xf32>
    %12 = arith.addf %9, %11 : vector<8x25xf32>
    %cst_11 = arith.constant 0.000000e+00 : f32
    %13 = vector.broadcast %cst_11 : f32 to vector<8x25xf32>
    %14 = arith.maximumf %12, %13 : vector<8x25xf32>
    %c0_12 = arith.constant 0 : index
    %c0_13 = arith.constant 0 : index
    %15 = vector.load %arg7[%c0_12, %c0_13] : memref<25x32xf32, #tpu.memory_space<vmem>>, vector<25x32xf32>
    %cst_14 = arith.constant dense<0.000000e+00> : vector<8x32xf32>
    %16 = tpu.matmul %14, %15, %cst_14 {dimension_numbers = #tpu.dot_dimension_numbers<[1], [0], [0], [1], [0, 0, 1, 1], [], []>} : vector<8x25xf32>, vector<25x32xf32>, vector<8x32xf32> -> vector<8x32xf32>
    %c0_15 = arith.constant 0 : index
    %c0_16 = arith.constant 0 : index
    %17 = vector.load %arg8[%c0_15, %c0_16] : memref<1x32xf32, #tpu.memory_space<vmem>>, vector<1x32xf32>
    %18 = vector.broadcast %17 : vector<1x32xf32> to vector<8x32xf32>
    %19 = arith.addf %16, %18 : vector<8x32xf32>
    %c0_17 = arith.constant 0 : index
    %c0_18 = arith.constant 0 : index
    %20 = vector.load %arg1[%c0_17, %c0_18] : memref<64x4xf32, #tpu.memory_space<vmem>>, vector<64x4xf32>
    %c0_19 = arith.constant 0 : index
    %c0_20 = arith.constant 0 : index
    %21 = vector.load %arg6[%c0_19, %c0_20] : memref<4x32xf32, #tpu.memory_space<vmem>>, vector<4x32xf32>
    %cst_21 = arith.constant dense<0.000000e+00> : vector<64x32xf32>
    %22 = tpu.matmul %20, %21, %cst_21 {dimension_numbers = #tpu.dot_dimension_numbers<[1], [0], [0], [1], [0, 0, 1, 1], [], []>} : vector<64x4xf32>, vector<4x32xf32>, vector<64x32xf32> -> vector<64x32xf32>
    %23 = tpu.concatenate %19, %19, %19, %19, %19, %19, %19, %19 in 0 : vector<8x32xf32>, vector<8x32xf32>, vector<8x32xf32>, vector<8x32xf32>, vector<8x32xf32>, vector<8x32xf32>, vector<8x32xf32>, vector<8x32xf32> -> vector<64x32xf32>
    %24 = arith.addf %22, %23 : vector<64x32xf32>
    %cst_22 = arith.constant 0.000000e+00 : f32
    %25 = vector.broadcast %cst_22 : f32 to vector<64x32xf32>
    %26 = arith.maximumf %24, %25 : vector<64x32xf32>
    %c0_23 = arith.constant 0 : index
    %c0_24 = arith.constant 0 : index
    %27 = vector.load %arg9[%c0_23, %c0_24] : memref<32x128xf32, #tpu.memory_space<vmem>>, vector<32x128xf32>
    %cst_25 = arith.constant dense<0.000000e+00> : vector<64x128xf32>
    %28 = tpu.matmul %26, %27, %cst_25 {dimension_numbers = #tpu.dot_dimension_numbers<[1], [0], [0], [1], [0, 0, 1, 1], [], []>} : vector<64x32xf32>, vector<32x128xf32>, vector<64x128xf32> -> vector<64x128xf32>
    %c0_26 = arith.constant 0 : index
    %c0_27 = arith.constant 0 : index
    %29 = vector.load %arg11[%c0_26, %c0_27] : memref<1x128xf32, #tpu.memory_space<vmem>>, vector<1x128xf32>
    %30 = vector.broadcast %29 : vector<1x128xf32> to vector<64x128xf32>
    %31 = arith.addf %28, %30 : vector<64x128xf32>
    %c0_28 = arith.constant 0 : index
    %c0_29 = arith.constant 0 : index
    %32 = vector.load %arg10[%c0_28, %c0_29] : memref<32x128xf32, #tpu.memory_space<vmem>>, vector<32x128xf32>
    %cst_30 = arith.constant 0.000000e+00 : f32
    %33 = vector.broadcast %cst_30 : f32 to vector<8x32xf32>
    %cst_31 = arith.constant 0.000000e+00 : f32
    %34 = vector.broadcast %cst_31 : f32 to vector<8x32xf32>
    %35 = vector.extract_strided_slice %31 {offsets = [0, 0], sizes = [8, 128], strides = [1, 1]} : vector<64x128xf32> to vector<8x128xf32>
    %cst_32 = arith.constant dense<0.000000e+00> : vector<8x128xf32>
    %36 = tpu.matmul %33, %32, %cst_32 {dimension_numbers = #tpu.dot_dimension_numbers<[1], [0], [0], [1], [0, 0, 1, 1], [], []>} : vector<8x32xf32>, vector<32x128xf32>, vector<8x128xf32> -> vector<8x128xf32>
    %37 = arith.addf %35, %36 : vector<8x128xf32>
    %38 = vector.extract_strided_slice %37 {offsets = [0, 0], sizes = [8, 32], strides = [1, 1]} : vector<8x128xf32> to vector<8x32xf32>
    %cst_33 = arith.constant 5.000000e-01 : f32
    %39 = vector.broadcast %cst_33 : f32 to vector<8x32xf32>
    %40 = arith.mulf %39, %38 : vector<8x32xf32>
    %41 = math.tanh %40 : vector<8x32xf32>
    %cst_34 = arith.constant 1.000000e+00 : f32
    %42 = vector.broadcast %cst_34 : f32 to vector<8x32xf32>
    %43 = arith.addf %41, %42 : vector<8x32xf32>
    %cst_35 = arith.constant 5.000000e-01 : f32
    %44 = vector.broadcast %cst_35 : f32 to vector<8x32xf32>
    %45 = arith.mulf %44, %43 : vector<8x32xf32>
    %46 = vector.extract_strided_slice %37 {offsets = [0, 32], sizes = [8, 32], strides = [1, 1]} : vector<8x128xf32> to vector<8x32xf32>
    %cst_36 = arith.constant 5.000000e-01 : f32
    %47 = vector.broadcast %cst_36 : f32 to vector<8x32xf32>
    %48 = arith.mulf %47, %46 : vector<8x32xf32>
    %49 = math.tanh %48 : vector<8x32xf32>
    %cst_37 = arith.constant 1.000000e+00 : f32
    %50 = vector.broadcast %cst_37 : f32 to vector<8x32xf32>
    %51 = arith.addf %49, %50 : vector<8x32xf32>
    %cst_38 = arith.constant 5.000000e-01 : f32
    %52 = vector.broadcast %cst_38 : f32 to vector<8x32xf32>
    %53 = arith.mulf %52, %51 : vector<8x32xf32>
    %54 = vector.extract_strided_slice %37 {offsets = [0, 64], sizes = [8, 32], strides = [1, 1]} : vector<8x128xf32> to vector<8x32xf32>
    %55 = math.tanh %54 : vector<8x32xf32>
    %56 = vector.extract_strided_slice %37 {offsets = [0, 96], sizes = [8, 32], strides = [1, 1]} : vector<8x128xf32> to vector<8x32xf32>
    %cst_39 = arith.constant 5.000000e-01 : f32
    %57 = vector.broadcast %cst_39 : f32 to vector<8x32xf32>
    %58 = arith.mulf %57, %56 : vector<8x32xf32>
    %59 = math.tanh %58 : vector<8x32xf32>
    %cst_40 = arith.constant 1.000000e+00 : f32
    %60 = vector.broadcast %cst_40 : f32 to vector<8x32xf32>
    %61 = arith.addf %59, %60 : vector<8x32xf32>
    %cst_41 = arith.constant 5.000000e-01 : f32
    %62 = vector.broadcast %cst_41 : f32 to vector<8x32xf32>
    %63 = arith.mulf %62, %61 : vector<8x32xf32>
    %64 = arith.mulf %53, %34 : vector<8x32xf32>
    %65 = arith.mulf %45, %55 : vector<8x32xf32>
    %66 = arith.addf %64, %65 : vector<8x32xf32>
    %67 = math.tanh %66 : vector<8x32xf32>
    %68 = arith.mulf %63, %67 : vector<8x32xf32>
    %69 = vector.extract_strided_slice %31 {offsets = [8, 0], sizes = [8, 128], strides = [1, 1]} : vector<64x128xf32> to vector<8x128xf32>
    %cst_42 = arith.constant dense<0.000000e+00> : vector<8x128xf32>
    %70 = tpu.matmul %68, %32, %cst_42 {dimension_numbers = #tpu.dot_dimension_numbers<[1], [0], [0], [1], [0, 0, 1, 1], [], []>} : vector<8x32xf32>, vector<32x128xf32>, vector<8x128xf32> -> vector<8x128xf32>
    %71 = arith.addf %69, %70 : vector<8x128xf32>
    %72 = vector.extract_strided_slice %71 {offsets = [0, 0], sizes = [8, 32], strides = [1, 1]} : vector<8x128xf32> to vector<8x32xf32>
    %cst_43 = arith.constant 5.000000e-01 : f32
    %73 = vector.broadcast %cst_43 : f32 to vector<8x32xf32>
    %74 = arith.mulf %73, %72 : vector<8x32xf32>
    %75 = math.tanh %74 : vector<8x32xf32>
    %cst_44 = arith.constant 1.000000e+00 : f32
    %76 = vector.broadcast %cst_44 : f32 to vector<8x32xf32>
    %77 = arith.addf %75, %76 : vector<8x32xf32>
    %cst_45 = arith.constant 5.000000e-01 : f32
    %78 = vector.broadcast %cst_45 : f32 to vector<8x32xf32>
    %79 = arith.mulf %78, %77 : vector<8x32xf32>
    %80 = vector.extract_strided_slice %71 {offsets = [0, 32], sizes = [8, 32], strides = [1, 1]} : vector<8x128xf32> to vector<8x32xf32>
    %cst_46 = arith.constant 5.000000e-01 : f32
    %81 = vector.broadcast %cst_46 : f32 to vector<8x32xf32>
    %82 = arith.mulf %81, %80 : vector<8x32xf32>
    %83 = math.tanh %82 : vector<8x32xf32>
    %cst_47 = arith.constant 1.000000e+00 : f32
    %84 = vector.broadcast %cst_47 : f32 to vector<8x32xf32>
    %85 = arith.addf %83, %84 : vector<8x32xf32>
    %cst_48 = arith.constant 5.000000e-01 : f32
    %86 = vector.broadcast %cst_48 : f32 to vector<8x32xf32>
    %87 = arith.mulf %86, %85 : vector<8x32xf32>
    %88 = vector.extract_strided_slice %71 {offsets = [0, 64], sizes = [8, 32], strides = [1, 1]} : vector<8x128xf32> to vector<8x32xf32>
    %89 = math.tanh %88 : vector<8x32xf32>
    %90 = vector.extract_strided_slice %71 {offsets = [0, 96], sizes = [8, 32], strides = [1, 1]} : vector<8x128xf32> to vector<8x32xf32>
    %cst_49 = arith.constant 5.000000e-01 : f32
    %91 = vector.broadcast %cst_49 : f32 to vector<8x32xf32>
    %92 = arith.mulf %91, %90 : vector<8x32xf32>
    %93 = math.tanh %92 : vector<8x32xf32>
    %cst_50 = arith.constant 1.000000e+00 : f32
    %94 = vector.broadcast %cst_50 : f32 to vector<8x32xf32>
    %95 = arith.addf %93, %94 : vector<8x32xf32>
    %cst_51 = arith.constant 5.000000e-01 : f32
    %96 = vector.broadcast %cst_51 : f32 to vector<8x32xf32>
    %97 = arith.mulf %96, %95 : vector<8x32xf32>
    %98 = arith.mulf %87, %66 : vector<8x32xf32>
    %99 = arith.mulf %79, %89 : vector<8x32xf32>
    %100 = arith.addf %98, %99 : vector<8x32xf32>
    %101 = math.tanh %100 : vector<8x32xf32>
    %102 = arith.mulf %97, %101 : vector<8x32xf32>
    %103 = vector.extract_strided_slice %31 {offsets = [16, 0], sizes = [8, 128], strides = [1, 1]} : vector<64x128xf32> to vector<8x128xf32>
    %cst_52 = arith.constant dense<0.000000e+00> : vector<8x128xf32>
    %104 = tpu.matmul %102, %32, %cst_52 {dimension_numbers = #tpu.dot_dimension_numbers<[1], [0], [0], [1], [0, 0, 1, 1], [], []>} : vector<8x32xf32>, vector<32x128xf32>, vector<8x128xf32> -> vector<8x128xf32>
    %105 = arith.addf %103, %104 : vector<8x128xf32>
    %106 = vector.extract_strided_slice %105 {offsets = [0, 0], sizes = [8, 32], strides = [1, 1]} : vector<8x128xf32> to vector<8x32xf32>
    %cst_53 = arith.constant 5.000000e-01 : f32
    %107 = vector.broadcast %cst_53 : f32 to vector<8x32xf32>
    %108 = arith.mulf %107, %106 : vector<8x32xf32>
    %109 = math.tanh %108 : vector<8x32xf32>
    %cst_54 = arith.constant 1.000000e+00 : f32
    %110 = vector.broadcast %cst_54 : f32 to vector<8x32xf32>
    %111 = arith.addf %109, %110 : vector<8x32xf32>
    %cst_55 = arith.constant 5.000000e-01 : f32
    %112 = vector.broadcast %cst_55 : f32 to vector<8x32xf32>
    %113 = arith.mulf %112, %111 : vector<8x32xf32>
    %114 = vector.extract_strided_slice %105 {offsets = [0, 32], sizes = [8, 32], strides = [1, 1]} : vector<8x128xf32> to vector<8x32xf32>
    %cst_56 = arith.constant 5.000000e-01 : f32
    %115 = vector.broadcast %cst_56 : f32 to vector<8x32xf32>
    %116 = arith.mulf %115, %114 : vector<8x32xf32>
    %117 = math.tanh %116 : vector<8x32xf32>
    %cst_57 = arith.constant 1.000000e+00 : f32
    %118 = vector.broadcast %cst_57 : f32 to vector<8x32xf32>
    %119 = arith.addf %117, %118 : vector<8x32xf32>
    %cst_58 = arith.constant 5.000000e-01 : f32
    %120 = vector.broadcast %cst_58 : f32 to vector<8x32xf32>
    %121 = arith.mulf %120, %119 : vector<8x32xf32>
    %122 = vector.extract_strided_slice %105 {offsets = [0, 64], sizes = [8, 32], strides = [1, 1]} : vector<8x128xf32> to vector<8x32xf32>
    %123 = math.tanh %122 : vector<8x32xf32>
    %124 = vector.extract_strided_slice %105 {offsets = [0, 96], sizes = [8, 32], strides = [1, 1]} : vector<8x128xf32> to vector<8x32xf32>
    %cst_59 = arith.constant 5.000000e-01 : f32
    %125 = vector.broadcast %cst_59 : f32 to vector<8x32xf32>
    %126 = arith.mulf %125, %124 : vector<8x32xf32>
    %127 = math.tanh %126 : vector<8x32xf32>
    %cst_60 = arith.constant 1.000000e+00 : f32
    %128 = vector.broadcast %cst_60 : f32 to vector<8x32xf32>
    %129 = arith.addf %127, %128 : vector<8x32xf32>
    %cst_61 = arith.constant 5.000000e-01 : f32
    %130 = vector.broadcast %cst_61 : f32 to vector<8x32xf32>
    %131 = arith.mulf %130, %129 : vector<8x32xf32>
    %132 = arith.mulf %121, %100 : vector<8x32xf32>
    %133 = arith.mulf %113, %123 : vector<8x32xf32>
    %134 = arith.addf %132, %133 : vector<8x32xf32>
    %135 = math.tanh %134 : vector<8x32xf32>
    %136 = arith.mulf %131, %135 : vector<8x32xf32>
    %137 = vector.extract_strided_slice %31 {offsets = [24, 0], sizes = [8, 128], strides = [1, 1]} : vector<64x128xf32> to vector<8x128xf32>
    %cst_62 = arith.constant dense<0.000000e+00> : vector<8x128xf32>
    %138 = tpu.matmul %136, %32, %cst_62 {dimension_numbers = #tpu.dot_dimension_numbers<[1], [0], [0], [1], [0, 0, 1, 1], [], []>} : vector<8x32xf32>, vector<32x128xf32>, vector<8x128xf32> -> vector<8x128xf32>
    %139 = arith.addf %137, %138 : vector<8x128xf32>
    %140 = vector.extract_strided_slice %139 {offsets = [0, 0], sizes = [8, 32], strides = [1, 1]} : vector<8x128xf32> to vector<8x32xf32>
    %cst_63 = arith.constant 5.000000e-01 : f32
    %141 = vector.broadcast %cst_63 : f32 to vector<8x32xf32>
    %142 = arith.mulf %141, %140 : vector<8x32xf32>
    %143 = math.tanh %142 : vector<8x32xf32>
    %cst_64 = arith.constant 1.000000e+00 : f32
    %144 = vector.broadcast %cst_64 : f32 to vector<8x32xf32>
    %145 = arith.addf %143, %144 : vector<8x32xf32>
    %cst_65 = arith.constant 5.000000e-01 : f32
    %146 = vector.broadcast %cst_65 : f32 to vector<8x32xf32>
    %147 = arith.mulf %146, %145 : vector<8x32xf32>
    %148 = vector.extract_strided_slice %139 {offsets = [0, 32], sizes = [8, 32], strides = [1, 1]} : vector<8x128xf32> to vector<8x32xf32>
    %cst_66 = arith.constant 5.000000e-01 : f32
    %149 = vector.broadcast %cst_66 : f32 to vector<8x32xf32>
    %150 = arith.mulf %149, %148 : vector<8x32xf32>
    %151 = math.tanh %150 : vector<8x32xf32>
    %cst_67 = arith.constant 1.000000e+00 : f32
    %152 = vector.broadcast %cst_67 : f32 to vector<8x32xf32>
    %153 = arith.addf %151, %152 : vector<8x32xf32>
    %cst_68 = arith.constant 5.000000e-01 : f32
    %154 = vector.broadcast %cst_68 : f32 to vector<8x32xf32>
    %155 = arith.mulf %154, %153 : vector<8x32xf32>
    %156 = vector.extract_strided_slice %139 {offsets = [0, 64], sizes = [8, 32], strides = [1, 1]} : vector<8x128xf32> to vector<8x32xf32>
    %157 = math.tanh %156 : vector<8x32xf32>
    %158 = vector.extract_strided_slice %139 {offsets = [0, 96], sizes = [8, 32], strides = [1, 1]} : vector<8x128xf32> to vector<8x32xf32>
    %cst_69 = arith.constant 5.000000e-01 : f32
    %159 = vector.broadcast %cst_69 : f32 to vector<8x32xf32>
    %160 = arith.mulf %159, %158 : vector<8x32xf32>
    %161 = math.tanh %160 : vector<8x32xf32>
    %cst_70 = arith.constant 1.000000e+00 : f32
    %162 = vector.broadcast %cst_70 : f32 to vector<8x32xf32>
    %163 = arith.addf %161, %162 : vector<8x32xf32>
    %cst_71 = arith.constant 5.000000e-01 : f32
    %164 = vector.broadcast %cst_71 : f32 to vector<8x32xf32>
    %165 = arith.mulf %164, %163 : vector<8x32xf32>
    %166 = arith.mulf %155, %134 : vector<8x32xf32>
    %167 = arith.mulf %147, %157 : vector<8x32xf32>
    %168 = arith.addf %166, %167 : vector<8x32xf32>
    %169 = math.tanh %168 : vector<8x32xf32>
    %170 = arith.mulf %165, %169 : vector<8x32xf32>
    %171 = vector.extract_strided_slice %31 {offsets = [32, 0], sizes = [8, 128], strides = [1, 1]} : vector<64x128xf32> to vector<8x128xf32>
    %cst_72 = arith.constant dense<0.000000e+00> : vector<8x128xf32>
    %172 = tpu.matmul %170, %32, %cst_72 {dimension_numbers = #tpu.dot_dimension_numbers<[1], [0], [0], [1], [0, 0, 1, 1], [], []>} : vector<8x32xf32>, vector<32x128xf32>, vector<8x128xf32> -> vector<8x128xf32>
    %173 = arith.addf %171, %172 : vector<8x128xf32>
    %174 = vector.extract_strided_slice %173 {offsets = [0, 0], sizes = [8, 32], strides = [1, 1]} : vector<8x128xf32> to vector<8x32xf32>
    %cst_73 = arith.constant 5.000000e-01 : f32
    %175 = vector.broadcast %cst_73 : f32 to vector<8x32xf32>
    %176 = arith.mulf %175, %174 : vector<8x32xf32>
    %177 = math.tanh %176 : vector<8x32xf32>
    %cst_74 = arith.constant 1.000000e+00 : f32
    %178 = vector.broadcast %cst_74 : f32 to vector<8x32xf32>
    %179 = arith.addf %177, %178 : vector<8x32xf32>
    %cst_75 = arith.constant 5.000000e-01 : f32
    %180 = vector.broadcast %cst_75 : f32 to vector<8x32xf32>
    %181 = arith.mulf %180, %179 : vector<8x32xf32>
    %182 = vector.extract_strided_slice %173 {offsets = [0, 32], sizes = [8, 32], strides = [1, 1]} : vector<8x128xf32> to vector<8x32xf32>
    %cst_76 = arith.constant 5.000000e-01 : f32
    %183 = vector.broadcast %cst_76 : f32 to vector<8x32xf32>
    %184 = arith.mulf %183, %182 : vector<8x32xf32>
    %185 = math.tanh %184 : vector<8x32xf32>
    %cst_77 = arith.constant 1.000000e+00 : f32
    %186 = vector.broadcast %cst_77 : f32 to vector<8x32xf32>
    %187 = arith.addf %185, %186 : vector<8x32xf32>
    %cst_78 = arith.constant 5.000000e-01 : f32
    %188 = vector.broadcast %cst_78 : f32 to vector<8x32xf32>
    %189 = arith.mulf %188, %187 : vector<8x32xf32>
    %190 = vector.extract_strided_slice %173 {offsets = [0, 64], sizes = [8, 32], strides = [1, 1]} : vector<8x128xf32> to vector<8x32xf32>
    %191 = math.tanh %190 : vector<8x32xf32>
    %192 = vector.extract_strided_slice %173 {offsets = [0, 96], sizes = [8, 32], strides = [1, 1]} : vector<8x128xf32> to vector<8x32xf32>
    %cst_79 = arith.constant 5.000000e-01 : f32
    %193 = vector.broadcast %cst_79 : f32 to vector<8x32xf32>
    %194 = arith.mulf %193, %192 : vector<8x32xf32>
    %195 = math.tanh %194 : vector<8x32xf32>
    %cst_80 = arith.constant 1.000000e+00 : f32
    %196 = vector.broadcast %cst_80 : f32 to vector<8x32xf32>
    %197 = arith.addf %195, %196 : vector<8x32xf32>
    %cst_81 = arith.constant 5.000000e-01 : f32
    %198 = vector.broadcast %cst_81 : f32 to vector<8x32xf32>
    %199 = arith.mulf %198, %197 : vector<8x32xf32>
    %200 = arith.mulf %189, %168 : vector<8x32xf32>
    %201 = arith.mulf %181, %191 : vector<8x32xf32>
    %202 = arith.addf %200, %201 : vector<8x32xf32>
    %203 = math.tanh %202 : vector<8x32xf32>
    %204 = arith.mulf %199, %203 : vector<8x32xf32>
    %205 = vector.extract_strided_slice %31 {offsets = [40, 0], sizes = [8, 128], strides = [1, 1]} : vector<64x128xf32> to vector<8x128xf32>
    %cst_82 = arith.constant dense<0.000000e+00> : vector<8x128xf32>
    %206 = tpu.matmul %204, %32, %cst_82 {dimension_numbers = #tpu.dot_dimension_numbers<[1], [0], [0], [1], [0, 0, 1, 1], [], []>} : vector<8x32xf32>, vector<32x128xf32>, vector<8x128xf32> -> vector<8x128xf32>
    %207 = arith.addf %205, %206 : vector<8x128xf32>
    %208 = vector.extract_strided_slice %207 {offsets = [0, 0], sizes = [8, 32], strides = [1, 1]} : vector<8x128xf32> to vector<8x32xf32>
    %cst_83 = arith.constant 5.000000e-01 : f32
    %209 = vector.broadcast %cst_83 : f32 to vector<8x32xf32>
    %210 = arith.mulf %209, %208 : vector<8x32xf32>
    %211 = math.tanh %210 : vector<8x32xf32>
    %cst_84 = arith.constant 1.000000e+00 : f32
    %212 = vector.broadcast %cst_84 : f32 to vector<8x32xf32>
    %213 = arith.addf %211, %212 : vector<8x32xf32>
    %cst_85 = arith.constant 5.000000e-01 : f32
    %214 = vector.broadcast %cst_85 : f32 to vector<8x32xf32>
    %215 = arith.mulf %214, %213 : vector<8x32xf32>
    %216 = vector.extract_strided_slice %207 {offsets = [0, 32], sizes = [8, 32], strides = [1, 1]} : vector<8x128xf32> to vector<8x32xf32>
    %cst_86 = arith.constant 5.000000e-01 : f32
    %217 = vector.broadcast %cst_86 : f32 to vector<8x32xf32>
    %218 = arith.mulf %217, %216 : vector<8x32xf32>
    %219 = math.tanh %218 : vector<8x32xf32>
    %cst_87 = arith.constant 1.000000e+00 : f32
    %220 = vector.broadcast %cst_87 : f32 to vector<8x32xf32>
    %221 = arith.addf %219, %220 : vector<8x32xf32>
    %cst_88 = arith.constant 5.000000e-01 : f32
    %222 = vector.broadcast %cst_88 : f32 to vector<8x32xf32>
    %223 = arith.mulf %222, %221 : vector<8x32xf32>
    %224 = vector.extract_strided_slice %207 {offsets = [0, 64], sizes = [8, 32], strides = [1, 1]} : vector<8x128xf32> to vector<8x32xf32>
    %225 = math.tanh %224 : vector<8x32xf32>
    %226 = vector.extract_strided_slice %207 {offsets = [0, 96], sizes = [8, 32], strides = [1, 1]} : vector<8x128xf32> to vector<8x32xf32>
    %cst_89 = arith.constant 5.000000e-01 : f32
    %227 = vector.broadcast %cst_89 : f32 to vector<8x32xf32>
    %228 = arith.mulf %227, %226 : vector<8x32xf32>
    %229 = math.tanh %228 : vector<8x32xf32>
    %cst_90 = arith.constant 1.000000e+00 : f32
    %230 = vector.broadcast %cst_90 : f32 to vector<8x32xf32>
    %231 = arith.addf %229, %230 : vector<8x32xf32>
    %cst_91 = arith.constant 5.000000e-01 : f32
    %232 = vector.broadcast %cst_91 : f32 to vector<8x32xf32>
    %233 = arith.mulf %232, %231 : vector<8x32xf32>
    %234 = arith.mulf %223, %202 : vector<8x32xf32>
    %235 = arith.mulf %215, %225 : vector<8x32xf32>
    %236 = arith.addf %234, %235 : vector<8x32xf32>
    %237 = math.tanh %236 : vector<8x32xf32>
    %238 = arith.mulf %233, %237 : vector<8x32xf32>
    %239 = vector.extract_strided_slice %31 {offsets = [48, 0], sizes = [8, 128], strides = [1, 1]} : vector<64x128xf32> to vector<8x128xf32>
    %cst_92 = arith.constant dense<0.000000e+00> : vector<8x128xf32>
    %240 = tpu.matmul %238, %32, %cst_92 {dimension_numbers = #tpu.dot_dimension_numbers<[1], [0], [0], [1], [0, 0, 1, 1], [], []>} : vector<8x32xf32>, vector<32x128xf32>, vector<8x128xf32> -> vector<8x128xf32>
    %241 = arith.addf %239, %240 : vector<8x128xf32>
    %242 = vector.extract_strided_slice %241 {offsets = [0, 0], sizes = [8, 32], strides = [1, 1]} : vector<8x128xf32> to vector<8x32xf32>
    %cst_93 = arith.constant 5.000000e-01 : f32
    %243 = vector.broadcast %cst_93 : f32 to vector<8x32xf32>
    %244 = arith.mulf %243, %242 : vector<8x32xf32>
    %245 = math.tanh %244 : vector<8x32xf32>
    %cst_94 = arith.constant 1.000000e+00 : f32
    %246 = vector.broadcast %cst_94 : f32 to vector<8x32xf32>
    %247 = arith.addf %245, %246 : vector<8x32xf32>
    %cst_95 = arith.constant 5.000000e-01 : f32
    %248 = vector.broadcast %cst_95 : f32 to vector<8x32xf32>
    %249 = arith.mulf %248, %247 : vector<8x32xf32>
    %250 = vector.extract_strided_slice %241 {offsets = [0, 32], sizes = [8, 32], strides = [1, 1]} : vector<8x128xf32> to vector<8x32xf32>
    %cst_96 = arith.constant 5.000000e-01 : f32
    %251 = vector.broadcast %cst_96 : f32 to vector<8x32xf32>
    %252 = arith.mulf %251, %250 : vector<8x32xf32>
    %253 = math.tanh %252 : vector<8x32xf32>
    %cst_97 = arith.constant 1.000000e+00 : f32
    %254 = vector.broadcast %cst_97 : f32 to vector<8x32xf32>
    %255 = arith.addf %253, %254 : vector<8x32xf32>
    %cst_98 = arith.constant 5.000000e-01 : f32
    %256 = vector.broadcast %cst_98 : f32 to vector<8x32xf32>
    %257 = arith.mulf %256, %255 : vector<8x32xf32>
    %258 = vector.extract_strided_slice %241 {offsets = [0, 64], sizes = [8, 32], strides = [1, 1]} : vector<8x128xf32> to vector<8x32xf32>
    %259 = math.tanh %258 : vector<8x32xf32>
    %260 = vector.extract_strided_slice %241 {offsets = [0, 96], sizes = [8, 32], strides = [1, 1]} : vector<8x128xf32> to vector<8x32xf32>
    %cst_99 = arith.constant 5.000000e-01 : f32
    %261 = vector.broadcast %cst_99 : f32 to vector<8x32xf32>
    %262 = arith.mulf %261, %260 : vector<8x32xf32>
    %263 = math.tanh %262 : vector<8x32xf32>
    %cst_100 = arith.constant 1.000000e+00 : f32
    %264 = vector.broadcast %cst_100 : f32 to vector<8x32xf32>
    %265 = arith.addf %263, %264 : vector<8x32xf32>
    %cst_101 = arith.constant 5.000000e-01 : f32
    %266 = vector.broadcast %cst_101 : f32 to vector<8x32xf32>
    %267 = arith.mulf %266, %265 : vector<8x32xf32>
    %268 = arith.mulf %257, %236 : vector<8x32xf32>
    %269 = arith.mulf %249, %259 : vector<8x32xf32>
    %270 = arith.addf %268, %269 : vector<8x32xf32>
    %271 = math.tanh %270 : vector<8x32xf32>
    %272 = arith.mulf %267, %271 : vector<8x32xf32>
    %273 = vector.extract_strided_slice %31 {offsets = [56, 0], sizes = [8, 128], strides = [1, 1]} : vector<64x128xf32> to vector<8x128xf32>
    %cst_102 = arith.constant dense<0.000000e+00> : vector<8x128xf32>
    %274 = tpu.matmul %272, %32, %cst_102 {dimension_numbers = #tpu.dot_dimension_numbers<[1], [0], [0], [1], [0, 0, 1, 1], [], []>} : vector<8x32xf32>, vector<32x128xf32>, vector<8x128xf32> -> vector<8x128xf32>
    %275 = arith.addf %273, %274 : vector<8x128xf32>
    %276 = vector.extract_strided_slice %275 {offsets = [0, 0], sizes = [8, 32], strides = [1, 1]} : vector<8x128xf32> to vector<8x32xf32>
    %cst_103 = arith.constant 5.000000e-01 : f32
    %277 = vector.broadcast %cst_103 : f32 to vector<8x32xf32>
    %278 = arith.mulf %277, %276 : vector<8x32xf32>
    %279 = math.tanh %278 : vector<8x32xf32>
    %cst_104 = arith.constant 1.000000e+00 : f32
    %280 = vector.broadcast %cst_104 : f32 to vector<8x32xf32>
    %281 = arith.addf %279, %280 : vector<8x32xf32>
    %cst_105 = arith.constant 5.000000e-01 : f32
    %282 = vector.broadcast %cst_105 : f32 to vector<8x32xf32>
    %283 = arith.mulf %282, %281 : vector<8x32xf32>
    %284 = vector.extract_strided_slice %275 {offsets = [0, 32], sizes = [8, 32], strides = [1, 1]} : vector<8x128xf32> to vector<8x32xf32>
    %cst_106 = arith.constant 5.000000e-01 : f32
    %285 = vector.broadcast %cst_106 : f32 to vector<8x32xf32>
    %286 = arith.mulf %285, %284 : vector<8x32xf32>
    %287 = math.tanh %286 : vector<8x32xf32>
    %cst_107 = arith.constant 1.000000e+00 : f32
    %288 = vector.broadcast %cst_107 : f32 to vector<8x32xf32>
    %289 = arith.addf %287, %288 : vector<8x32xf32>
    %cst_108 = arith.constant 5.000000e-01 : f32
    %290 = vector.broadcast %cst_108 : f32 to vector<8x32xf32>
    %291 = arith.mulf %290, %289 : vector<8x32xf32>
    %292 = vector.extract_strided_slice %275 {offsets = [0, 64], sizes = [8, 32], strides = [1, 1]} : vector<8x128xf32> to vector<8x32xf32>
    %293 = math.tanh %292 : vector<8x32xf32>
    %294 = vector.extract_strided_slice %275 {offsets = [0, 96], sizes = [8, 32], strides = [1, 1]} : vector<8x128xf32> to vector<8x32xf32>
    %cst_109 = arith.constant 5.000000e-01 : f32
    %295 = vector.broadcast %cst_109 : f32 to vector<8x32xf32>
    %296 = arith.mulf %295, %294 : vector<8x32xf32>
    %297 = math.tanh %296 : vector<8x32xf32>
    %cst_110 = arith.constant 1.000000e+00 : f32
    %298 = vector.broadcast %cst_110 : f32 to vector<8x32xf32>
    %299 = arith.addf %297, %298 : vector<8x32xf32>
    %cst_111 = arith.constant 5.000000e-01 : f32
    %300 = vector.broadcast %cst_111 : f32 to vector<8x32xf32>
    %301 = arith.mulf %300, %299 : vector<8x32xf32>
    %302 = arith.mulf %291, %270 : vector<8x32xf32>
    %303 = arith.mulf %283, %293 : vector<8x32xf32>
    %304 = arith.addf %302, %303 : vector<8x32xf32>
    %305 = math.tanh %304 : vector<8x32xf32>
    %306 = arith.mulf %301, %305 : vector<8x32xf32>
    %307 = tpu.concatenate %68, %102, %136, %170, %204, %238, %272, %306 in 0 : vector<8x32xf32>, vector<8x32xf32>, vector<8x32xf32>, vector<8x32xf32>, vector<8x32xf32>, vector<8x32xf32>, vector<8x32xf32>, vector<8x32xf32> -> vector<64x32xf32>
    %c0_112 = arith.constant 0 : index
    %c0_113 = arith.constant 0 : index
    %308 = vector.load %arg12[%c0_112, %c0_113] : memref<32x2xf32, #tpu.memory_space<vmem>>, vector<32x2xf32>
    %cst_114 = arith.constant dense<0.000000e+00> : vector<64x2xf32>
    %309 = tpu.matmul %307, %308, %cst_114 {dimension_numbers = #tpu.dot_dimension_numbers<[1], [0], [0], [1], [0, 0, 1, 1], [], []>} : vector<64x32xf32>, vector<32x2xf32>, vector<64x2xf32> -> vector<64x2xf32>
    %c0_115 = arith.constant 0 : index
    %c0_116 = arith.constant 0 : index
    %310 = vector.load %arg13[%c0_115, %c0_116] : memref<1x2xf32, #tpu.memory_space<vmem>>, vector<1x2xf32>
    %311 = vector.broadcast %310 : vector<1x2xf32> to vector<64x2xf32>
    %312 = arith.addf %309, %311 : vector<64x2xf32>
    %c0_117 = arith.constant 0 : index
    %c0_118 = arith.constant 0 : index
    %313 = vector.load %arg14[%c0_117, %c0_118] : memref<64x2xf32, #tpu.memory_space<vmem>>, vector<64x2xf32>
    tpu.vector_store %arg14[%c0_117, %c0_118], %312 {strides = array<i32>} : memref<64x2xf32, #tpu.memory_space<vmem>>, vector<64x2xf32>,
    return
  }
}

</mosaic_0001>

<llo_original>
// kernel: tile.13
$region0: #{tile.13}
  #allocation0 [shape = 's32[1]{0}', space=sflag, size = 0x4, scoped, tag = 'scoped memory for tile.13']
  %s0 = inlined_call_operand.vmem [shape: f32[10], index: 0, kind: input, shape index: {}]
  %s1 = inlined_call_operand.vmem [shape: f32[7,10], index: 1, kind: output, shape index: {}]
  // Predicated region
  $region2: #{tile.13} parent=0 // pred_check
    _
  $region3: #{tile.13} parent=0 // pred_check_branch
    %3 = sbr.rel (0) target = $region5
  $region4: #{tile.13} parent=0 // pred_region
    _
  $region5: #{tile.13} parent=0 // pred_fallthru
    _
  %v4 = vld [vmem:[%s0] ss:$0 sm:$0xff]
  %5 = vst [vmem:[%s1] sm:$0xff] %v4

// kernel: tile.14
$region0: #{tile.14}
  %s0 = inlined_call_operand.vmem [shape: f32[7,10], index: 0, kind: input, shape index: {}]
  %s1 = inlined_call_operand.vmem [shape: f32[1,70], index: 1, kind: output, shape index: {}]
  $region1: #{tile.14} parent=0
    #allocation0 [shape = 'u8[4096]{0}', space=vmem, size = 0x1000, scoped, tag = 'scoped mem for output reshape']
    %v2 = vld [vmem:[%s0] sm:$0x1]
    %vm3 = vcmask 80896
    %4 = vst.msk [vmem:[#allocation0] sm:$0x1] %vm3, %v2
    %s5 = scalar_lea.vmem %s0, 6
    %v6 = vld [vmem:[%s5] sm:$0x1]
    %7 = vrot.lane.b32.xlu0 %v6, 60
    %v8 = vpop.permute.xlu0 %7
    %vm9 = vcmask 572896
    %10 = vst.msk [vmem:[#allocation0] sm:$0x1] %vm9, %v8
    %s11 = scalar_lea.vmem %s0, 5
    %v12 = vld [vmem:[%s11] sm:$0x1]
    %13 = vrot.lane.b32.xlu0 %v12, 50
    %v14 = vpop.permute.xlu0 %13
    %vm15 = vcmask 490896
    %16 = vst.msk [vmem:[#allocation0] sm:$0x1] %vm15, %v14
    %s17 = scalar_lea.vmem %s0, 4
    %v18 = vld [vmem:[%s17] sm:$0x1]
    %19 = vrot.lane.b32.xlu0 %v18, 40
    %v20 = vpop.permute.xlu0 %19
    %vm21 = vcmask 408896
    %22 = vst.msk [vmem:[#allocation0] sm:$0x1] %vm21, %v20
    %s23 = scalar_lea.vmem %s0, 3
    %v24 = vld [vmem:[%s23] sm:$0x1]
    %25 = vrot.lane.b32.xlu0 %v24, 30
    %v26 = vpop.permute.xlu0 %25
    %vm27 = vcmask 326896
    %28 = vst.msk [vmem:[#allocation0] sm:$0x1] %vm27, %v26
    %s29 = scalar_lea.vmem %s0, 2
    %v30 = vld [vmem:[%s29] sm:$0x1]
    %31 = vrot.lane.b32.xlu0 %v30, 20
    %v32 = vpop.permute.xlu0 %31
    %vm33 = vcmask 244896
    %34 = vst.msk [vmem:[#allocation0] sm:$0x1] %vm33, %v32
    %s35 = scalar_lea.vmem %s0, 1
    %v36 = vld [vmem:[%s35] sm:$0x1]
    %37 = vrot.lane.b32.xlu0 %v36, 10
    %v38 = vpop.permute.xlu0 %37
    %vm39 = vcmask 162896
    %40 = vst.msk [vmem:[#allocation0] sm:$0x1] %vm39, %v38
    %s42 = sshllo.u32 0, 1
    %v44 = vld [vmem:[#allocation0] sm:%s42]
    %s45 = sshllo.u32 0, 1
    %46 = vst [vmem:[%s1] sm:%s45] %v44

// kernel: tile.18
$region0: #{tile.18}
  #allocation0 [shape = 's32[1]{0}', space=sflag, size = 0x4, scoped, tag = 'scoped memory for tile.18']
  %s0 = inlined_call_operand.vmem [shape: f32[5], index: 0, kind: input, shape index: {}]
  %s1 = inlined_call_operand.vmem [shape: f32[5,5], index: 1, kind: output, shape index: {}]
  // Predicated region
  $region2: #{tile.18} parent=0 // pred_check
    _
  $region3: #{tile.18} parent=0 // pred_check_branch
    %3 = sbr.rel (0) target = $region5
  $region4: #{tile.18} parent=0 // pred_region
    _
  $region5: #{tile.18} parent=0 // pred_fallthru
    _
  %v4 = vld [vmem:[%s0] ss:$0 sm:$0xff]
  %5 = vst [vmem:[%s1] sm:$0xff] %v4

// kernel: tile.19
$region0: #{tile.19}
  %s0 = inlined_call_operand.vmem [shape: f32[5,5], index: 0, kind: input, shape index: {}]
  %s1 = inlined_call_operand.vmem [shape: f32[1,25], index: 1, kind: output, shape index: {}]
  $region1: #{tile.19} parent=0
    #allocation0 [shape = 'u8[4096]{0}', space=vmem, size = 0x1000, scoped, tag = 'scoped mem for output reshape']
    %v2 = vld [vmem:[%s0] sm:$0x1]
    %vm3 = vcmask 39936
    %4 = vst.msk [vmem:[#allocation0] sm:$0x1] %vm3, %v2
    %s5 = scalar_lea.vmem %s0, 4
    %v6 = vld [vmem:[%s5] sm:$0x1]
    %7 = vrot.lane.b32.xlu0 %v6, 20
    %v8 = vpop.permute.xlu0 %7
    %vm9 = vcmask 203936
    %10 = vst.msk [vmem:[#allocation0] sm:$0x1] %vm9, %v8
    %s11 = scalar_lea.vmem %s0, 3
    %v12 = vld [vmem:[%s11] sm:$0x1]
    %13 = vrot.lane.b32.xlu0 %v12, 15
    %v14 = vpop.permute.xlu0 %13
    %vm15 = vcmask 162936
    %16 = vst.msk [vmem:[#allocation0] sm:$0x1] %vm15, %v14
    %s17 = scalar_lea.vmem %s0, 2
    %v18 = vld [vmem:[%s17] sm:$0x1]
    %19 = vrot.lane.b32.xlu0 %v18, 10
    %v20 = vpop.permute.xlu0 %19
    %vm21 = vcmask 121936
    %22 = vst.msk [vmem:[#allocation0] sm:$0x1] %vm21, %v20
    %s23 = scalar_lea.vmem %s0, 1
    %v24 = vld [vmem:[%s23] sm:$0x1]
    %25 = vrot.lane.b32.xlu0 %v24, 5
    %v26 = vpop.permute.xlu0 %25
    %vm27 = vcmask 80936
    %28 = vst.msk [vmem:[#allocation0] sm:$0x1] %vm27, %v26
    %s30 = sshllo.u32 0, 1
    %v32 = vld [vmem:[#allocation0] sm:%s30]
    %s33 = sshllo.u32 0, 1
    %34 = vst [vmem:[%s1] sm:%s33] %v32

// kernel: cnn1d_lc_forward.1
$region0: #{cnn1d_lc_forward.1}
  #allocation0 [shape = 'u32[]', space=smem, size = 0x4, offset = 0x4, fixed_abs, tag = 'smem constant byte address 0x4 - core index']
  #allocation1 [shape = 'u32[144,128]{1,0:T(1,128)}', space=vmem, size = 0x12000, scoped, tag = 'internal scratch']
  %s0 = inlined_call_operand.vmem [shape: f32[8,16], index: 0, kind: input, shape index: {}]
  %s1 = inlined_call_operand.vmem [shape: f32[64,4], index: 1, kind: input, shape index: {}]
  %s2 = inlined_call_operand.vmem [shape: f32[16,70], index: 2, kind: input, shape index: {}]
  %s3 = inlined_call_operand.vmem [shape: f32[1,70], index: 3, kind: input, shape index: {}]
  %s4 = inlined_call_operand.vmem [shape: f32[70,25], index: 4, kind: input, shape index: {}]
  %s5 = inlined_call_operand.vmem [shape: f32[1,25], index: 5, kind: input, shape index: {}]
  %s6 = inlined_call_operand.vmem [shape: f32[4,32], index: 6, kind: input, shape index: {}]
  %s7 = inlined_call_operand.vmem [shape: f32[25,32], index: 7, kind: input, shape index: {}]
  %s8 = inlined_call_operand.vmem [shape: f32[1,32], index: 8, kind: input, shape index: {}]
  %s9 = inlined_call_operand.vmem [shape: f32[32,128], index: 9, kind: input, shape index: {}]
  %s10 = inlined_call_operand.vmem [shape: f32[32,128], index: 10, kind: input, shape index: {}]
  %s11 = inlined_call_operand.vmem [shape: f32[1,128], index: 11, kind: input, shape index: {}]
  %s12 = inlined_call_operand.vmem [shape: f32[32,2], index: 12, kind: input, shape index: {}]
  %s13 = inlined_call_operand.vmem [shape: f32[1,2], index: 13, kind: input, shape index: {}]
  %s14 = inlined_call_operand.vmem [shape: f32[64,2], index: 14, kind: output, shape index: {}]
  %s15 = sld [smem:[#allocation0]]
  $region66: #{cnn1d_lc_forward.1} parent=0
    _
  %s17 = ssub.s32 1, %s15
  %s18 = scalar_select 0, %s17, %s15
  // Predicated region
  $region2: #{cnn1d_lc_forward.1} parent=0 // pred_check
    _
  $region3: #{cnn1d_lc_forward.1} parent=0 // pred_check_branch
    %20 = sbr.rel (0) target = $region5
  $region4: #{cnn1d_lc_forward.1} parent=0 // pred_region
    _
  $region5: #{cnn1d_lc_forward.1} parent=0 // pred_fallthru
    _
  // Predicated region
  $region6: #{cnn1d_lc_forward.1} parent=0 // pred_check
    _
  $region7: #{cnn1d_lc_forward.1} parent=0 // pred_check_branch
    %22 = sbr.rel (0) target = $region9
  $region8: #{cnn1d_lc_forward.1} parent=0 // pred_region
    _
  $region9: #{cnn1d_lc_forward.1} parent=0 // pred_fallthru
    _
  // Predicated region
  $region10: #{cnn1d_lc_forward.1} parent=0 // pred_check
    _
  $region11: #{cnn1d_lc_forward.1} parent=0 // pred_check_branch
    %24 = sbr.rel (0) target = $region13
  $region12: #{cnn1d_lc_forward.1} parent=0 // pred_region
    _
  $region13: #{cnn1d_lc_forward.1} parent=0 // pred_fallthru
    _
  // Predicated region
  $region14: #{cnn1d_lc_forward.1} parent=0 // pred_check
    _
  $region15: #{cnn1d_lc_forward.1} parent=0 // pred_check_branch
    %26 = sbr.rel (0) target = $region17
  $region16: #{cnn1d_lc_forward.1} parent=0 // pred_region
    _
  $region17: #{cnn1d_lc_forward.1} parent=0 // pred_fallthru
    _
  // Predicated region
  $region18: #{cnn1d_lc_forward.1} parent=0 // pred_check
    _
  $region19: #{cnn1d_lc_forward.1} parent=0 // pred_check_branch
    %28 = sbr.rel (0) target = $region21
  $region20: #{cnn1d_lc_forward.1} parent=0 // pred_region
    _
  $region21: #{cnn1d_lc_forward.1} parent=0 // pred_fallthru
    _
  // Predicated region
  $region22: #{cnn1d_lc_forward.1} parent=0 // pred_check
    _
  $region23: #{cnn1d_lc_forward.1} parent=0 // pred_check_branch
    %30 = sbr.rel (0) target = $region25
  $region24: #{cnn1d_lc_forward.1} parent=0 // pred_region
    _
  $region25: #{cnn1d_lc_forward.1} parent=0 // pred_fallthru
    _
  // Predicated region
  $region26: #{cnn1d_lc_forward.1} parent=0 // pred_check
    _
  $region27: #{cnn1d_lc_forward.1} parent=0 // pred_check_branch
    %32 = sbr.rel (0) target = $region29
  $region28: #{cnn1d_lc_forward.1} parent=0 // pred_region
    _
  $region29: #{cnn1d_lc_forward.1} parent=0 // pred_fallthru
    _
  // Predicated region
  $region30: #{cnn1d_lc_forward.1} parent=0 // pred_check
    _
  $region31: #{cnn1d_lc_forward.1} parent=0 // pred_check_branch
    %34 = sbr.rel (0) target = $region33
  $region32: #{cnn1d_lc_forward.1} parent=0 // pred_region
    _
  $region33: #{cnn1d_lc_forward.1} parent=0 // pred_fallthru
    _
  // Predicated region
  $region34: #{cnn1d_lc_forward.1} parent=0 // pred_check
    _
  $region35: #{cnn1d_lc_forward.1} parent=0 // pred_check_branch
    %36 = sbr.rel (0) target = $region37
  $region36: #{cnn1d_lc_forward.1} parent=0 // pred_region
    _
  $region37: #{cnn1d_lc_forward.1} parent=0 // pred_fallthru
    _
  // Predicated region
  $region38: #{cnn1d_lc_forward.1} parent=0 // pred_check
    _
  $region39: #{cnn1d_lc_forward.1} parent=0 // pred_check_branch
    %38 = sbr.rel (0) target = $region41
  $region40: #{cnn1d_lc_forward.1} parent=0 // pred_region
    _
  $region41: #{cnn1d_lc_forward.1} parent=0 // pred_fallthru
    _
  // Predicated region
  $region42: #{cnn1d_lc_forward.1} parent=0 // pred_check
    _
  $region43: #{cnn1d_lc_forward.1} parent=0 // pred_check_branch
    %40 = sbr.rel (0) target = $region45
  $region44: #{cnn1d_lc_forward.1} parent=0 // pred_region
    _
  $region45: #{cnn1d_lc_forward.1} parent=0 // pred_fallthru
    _
  // Predicated region
  $region46: #{cnn1d_lc_forward.1} parent=0 // pred_check
    _
  $region47: #{cnn1d_lc_forward.1} parent=0 // pred_check_branch
    %42 = sbr.rel (0) target = $region49
  $region48: #{cnn1d_lc_forward.1} parent=0 // pred_region
    _
  $region49: #{cnn1d_lc_forward.1} parent=0 // pred_fallthru
    _
  // Predicated region
  $region50: #{cnn1d_lc_forward.1} parent=0 // pred_check
    _
  $region51: #{cnn1d_lc_forward.1} parent=0 // pred_check_branch
    %44 = sbr.rel (0) target = $region53
  $region52: #{cnn1d_lc_forward.1} parent=0 // pred_region
    _
  $region53: #{cnn1d_lc_forward.1} parent=0 // pred_fallthru
    _
  // Predicated region
  $region54: #{cnn1d_lc_forward.1} parent=0 // pred_check
    _
  $region55: #{cnn1d_lc_forward.1} parent=0 // pred_check_branch
    %46 = sbr.rel (0) target = $region57
  $region56: #{cnn1d_lc_forward.1} parent=0 // pred_region
    _
  $region57: #{cnn1d_lc_forward.1} parent=0 // pred_fallthru
    _
  %v47 = vld [vmem:[%s0] sm:$0xff]
  %v48 = vld [vmem:[%s2] sm:$0xff]
  %v49 = vld [vmem:[%s2 + $0x8] sm:$0xff]
  %v50 = vld [vmem:[%s3] sm:$0x1]
  %v52 = vlaneseq
  %v53 = vshrl.u32 %v52, 7
  %v54 = vsub.s32 0, %v53
  %v55 = vrot.slane %v50, %v54
  %vm57 = vcmask 130048
  %v59 = vsel %vm57, %v47, 0
  %61 = vmatprep.subr.mxu0 0.0
  %62 = vmatpush1.msra.mxu0 %v48
  %63 = vmatprep.subr.mxu0 0.0
  %64 = vmatpush1.msra.mxu0 %v49
  %65 = vmatprep.subr.mxu0 0.0
  %66 = vmatpush1.msra.mxu0 0.0
  %67 = vmatprep.subr.mxu0 0.0
  %68 = vmatpush1.msra.mxu0 0.0
  %69 = vmatprep.subr.mxu0 0.0
  %70 = vmatpush1.msra.mxu0 0.0
  %71 = vmatprep.subr.mxu0 0.0
  %72 = vmatpush1.msra.mxu0 0.0
  %73 = vmatprep.subr.mxu0 0.0
  %74 = vmatpush1.msra.mxu0 0.0
  %75 = vmatprep.subr.mxu0 0.0
  %76 = vmatpush1.msra.mxu0 0.0
  %77 = vmatprep.subr.mxu0 0.0
  %78 = vmatpush1.msra.mxu0 0.0
  %79 = vmatprep.subr.mxu0 0.0
  %80 = vmatpush1.msra.mxu0 0.0
  %81 = vmatprep.subr.mxu0 0.0
  %82 = vmatpush1.msra.mxu0 0.0
  %83 = vmatprep.subr.mxu0 0.0
  %84 = vmatpush1.msra.mxu0 0.0
  %85 = vmatprep.subr.mxu0 0.0
  %86 = vmatpush1.msra.mxu0 0.0
  %87 = vmatprep.subr.mxu0 0.0
  %88 = vmatpush1.msra.mxu0 0.0
  %89 = vmatprep.subr.mxu0 0.0
  %90 = vmatpush1.msra.mxu0 0.0
  %91 = vmatprep.subr.mxu0 0.0
  %92 = vmatpush1.msra.mxu0 0.0
  %93 = vmatprep.subr.mxu0 0.0
  %94 = vmatpush1.msra.mxu0 0.0
  %95 = vmatprep.subr.mxu0 0.0
  %96 = vmatpush1.msra.mxu0 0.0
  %97 = vmatprep.subr.mxu0 0.0
  %98 = vmatpush1.msra.mxu0 0.0
  %99 = vmatprep.subr.mxu0 0.0
  %100 = vmatpush1.msra.mxu0 0.0
  %101 = vmatprep.subr.mxu0 0.0
  %102 = vmatpush1.msra.mxu0 0.0
  %103 = vmatprep.subr.mxu0 0.0
  %104 = vmatpush1.msra.mxu0 0.0
  %105 = vmatprep.subr.mxu0 0.0
  %106 = vmatpush1.msra.mxu0 0.0
  %107 = vmatprep.subr.mxu0 0.0
  %108 = vmatpush1.msra.mxu0 0.0
  %109 = vmatprep.subr.mxu0 0.0
  %110 = vmatpush1.msra.mxu0 0.0
  %111 = vmatprep.subr.mxu0 0.0
  %112 = vmatpush1.msra.mxu0 0.0
  %113 = vmatprep.subr.mxu0 0.0
  %114 = vmatpush1.msra.mxu0 0.0
  %115 = vmatprep.subr.mxu0 0.0
  %116 = vmatpush1.msra.mxu0 0.0
  %117 = vmatprep.subr.mxu0 0.0
  %118 = vmatpush1.msra.mxu0 0.0
  %119 = vmatprep.subr.mxu0 0.0
  %120 = vmatpush1.msra.mxu0 0.0
  %121 = vmatprep.subr.mxu0 0.0
  %122 = vmatpush1.msra.mxu0 0.0
  %123 = vmatprep.subr.mxu0 0.0
  %124 = vmatpush1.msra.mxu0 0.0
  %125 = vmatprep.mubr.f32.mxu0 0.0
  %126 = vmatmul.mubr.f32.gmra.mrb[0].mxu0 %v59
  %v127 = vpop.f32.mrb[0].mxu0
  %v128 = vadd.f32 %v55, %v127
  %v129 = vpop.f32.mrb[0].mxu0
  %130 = vdwg.mxu0
  %v131 = vmax.f32 %v128, 0.0
  %v132 = vld [vmem:[%s4] sm:$0xff]
  %v133 = vld [vmem:[%s4 + $0x8] sm:$0xff]
  %v134 = vld [vmem:[%s4 + $0x10] sm:$0xff]
  %v135 = vld [vmem:[%s4 + $0x18] sm:$0xff]
  %v136 = vld [vmem:[%s4 + $0x20] sm:$0xff]
  %v137 = vld [vmem:[%s4 + $0x28] sm:$0xff]
  %v138 = vld [vmem:[%s4 + $0x30] sm:$0xff]
  %v139 = vld [vmem:[%s4 + $0x38] sm:$0xff]
  %v140 = vld [vmem:[%s4 + $0x40] sm:$0x3f]
  %v141 = vld [vmem:[%s5] sm:$0x1]
  %v143 = vlaneseq
  %v144 = vshrl.u32 %v143, 7
  %v145 = vsub.s32 0, %v144
  %v146 = vrot.slane %v141, %v145
  %vm148 = vcmask 572416
  %v150 = vsel %vm148, %v131, 0
  %vm152 = vcmask 1045504
  %v154 = vsel %vm152, %v140, 0
  %156 = vmatprep.subr.mxu0 0.0
  %157 = vmatpush1.msra.mxu0 %v132
  %158 = vmatprep.subr.mxu0 0.0
  %159 = vmatpush1.msra.mxu0 %v133
  %160 = vmatprep.subr.mxu0 0.0
  %161 = vmatpush1.msra.mxu0 %v134
  %162 = vmatprep.subr.mxu0 0.0
  %163 = vmatpush1.msra.mxu0 %v135
  %164 = vmatprep.subr.mxu0 0.0
  %165 = vmatpush1.msra.mxu0 %v136
  %166 = vmatprep.subr.mxu0 0.0
  %167 = vmatpush1.msra.mxu0 %v137
  %168 = vmatprep.subr.mxu0 0.0
  %169 = vmatpush1.msra.mxu0 %v138
  %170 = vmatprep.subr.mxu0 0.0
  %171 = vmatpush1.msra.mxu0 %v139
  %172 = vmatprep.subr.mxu0 0.0
  %173 = vmatpush1.msra.mxu0 %v154
  %174 = vmatprep.subr.mxu0 0.0
  %175 = vmatpush1.msra.mxu0 0.0
  %176 = vmatprep.subr.mxu0 0.0
  %177 = vmatpush1.msra.mxu0 0.0
  %178 = vmatprep.subr.mxu0 0.0
  %179 = vmatpush1.msra.mxu0 0.0
  %180 = vmatprep.subr.mxu0 0.0
  %181 = vmatpush1.msra.mxu0 0.0
  %182 = vmatprep.subr.mxu0 0.0
  %183 = vmatpush1.msra.mxu0 0.0
  %184 = vmatprep.subr.mxu0 0.0
  %185 = vmatpush1.msra.mxu0 0.0
  %186 = vmatprep.subr.mxu0 0.0
  %187 = vmatpush1.msra.mxu0 0.0
  %188 = vmatprep.subr.mxu0 0.0
  %189 = vmatpush1.msra.mxu0 0.0
  %190 = vmatprep.subr.mxu0 0.0
  %191 = vmatpush1.msra.mxu0 0.0
  %192 = vmatprep.subr.mxu0 0.0
  %193 = vmatpush1.msra.mxu0 0.0
  %194 = vmatprep.subr.mxu0 0.0
  %195 = vmatpush1.msra.mxu0 0.0
  %196 = vmatprep.subr.mxu0 0.0
  %197 = vmatpush1.msra.mxu0 0.0
  %198 = vmatprep.subr.mxu0 0.0
  %199 = vmatpush1.msra.mxu0 0.0
  %200 = vmatprep.subr.mxu0 0.0
  %201 = vmatpush1.msra.mxu0 0.0
  %202 = vmatprep.subr.mxu0 0.0
  %203 = vmatpush1.msra.mxu0 0.0
  %204 = vmatprep.subr.mxu0 0.0
  %205 = vmatpush1.msra.mxu0 0.0
  %206 = vmatprep.subr.mxu0 0.0
  %207 = vmatpush1.msra.mxu0 0.0
  %208 = vmatprep.subr.mxu0 0.0
  %209 = vmatpush1.msra.mxu0 0.0
  %210 = vmatprep.subr.mxu0 0.0
  %211 = vmatpush1.msra.mxu0 0.0
  %212 = vmatprep.subr.mxu0 0.0
  %213 = vmatpush1.msra.mxu0 0.0
  %214 = vmatprep.subr.mxu0 0.0
  %215 = vmatpush1.msra.mxu0 0.0
  %216 = vmatprep.subr.mxu0 0.0
  %217 = vmatpush1.msra.mxu0 0.0
  %218 = vmatprep.subr.mxu0 0.0
  %219 = vmatpush1.msra.mxu0 0.0
  %220 = vmatprep.mubr.f32.mxu0 0.0
  %221 = vmatmul.mubr.f32.gmra.mrb[0].mxu0 %v150
  %v222 = vpop.f32.mrb[0].mxu0
  %v223 = vadd.f32 %v146, %v222
  %v224 = vpop.f32.mrb[0].mxu0
  %225 = vdwg.mxu0
  %v226 = vmax.f32 %v223, 0.0
  %v227 = vld [vmem:[%s7] sm:$0xff]
  %v228 = vld [vmem:[%s7 + $0x8] sm:$0xff]
  %v229 = vld [vmem:[%s7 + $0x10] sm:$0xff]
  %v230 = vld [vmem:[%s7 + $0x18] sm:$0x1]
  %v231 = vld [vmem:[%s8] sm:$0x1]
  %v233 = vlaneseq
  %v234 = vshrl.u32 %v233, 7
  %v235 = vsub.s32 0, %v234
  %v236 = vrot.slane %v231, %v235
  %vm238 = vcmask 203776
  %v240 = vsel %vm238, %v226, 0
  %vm242 = vcmask 1040384
  %v244 = vsel %vm242, %v230, 0
  %246 = vmatprep.subr.mxu0 0.0
  %247 = vmatpush1.msra.mxu0 %v227
  %248 = vmatprep.subr.mxu0 0.0
  %249 = vmatpush1.msra.mxu0 %v228
  %250 = vmatprep.subr.mxu0 0.0
  %251 = vmatpush1.msra.mxu0 %v229
  %252 = vmatprep.subr.mxu0 0.0
  %253 = vmatpush1.msra.mxu0 %v244
  %254 = vmatprep.subr.mxu0 0.0
  %255 = vmatpush1.msra.mxu0 0.0
  %256 = vmatprep.subr.mxu0 0.0
  %257 = vmatpush1.msra.mxu0 0.0
  %258 = vmatprep.subr.mxu0 0.0
  %259 = vmatpush1.msra.mxu0 0.0
  %260 = vmatprep.subr.mxu0 0.0
  %261 = vmatpush1.msra.mxu0 0.0
  %262 = vmatprep.subr.mxu0 0.0
  %263 = vmatpush1.msra.mxu0 0.0
  %264 = vmatprep.subr.mxu0 0.0
  %265 = vmatpush1.msra.mxu0 0.0
  %266 = vmatprep.subr.mxu0 0.0
  %267 = vmatpush1.msra.mxu0 0.0
  %268 = vmatprep.subr.mxu0 0.0
  %269 = vmatpush1.msra.mxu0 0.0
  %270 = vmatprep.subr.mxu0 0.0
  %271 = vmatpush1.msra.mxu0 0.0
  %272 = vmatprep.subr.mxu0 0.0
  %273 = vmatpush1.msra.mxu0 0.0
  %274 = vmatprep.subr.mxu0 0.0
  %275 = vmatpush1.msra.mxu0 0.0
  %276 = vmatprep.subr.mxu0 0.0
  %277 = vmatpush1.msra.mxu0 0.0
  %278 = vmatprep.subr.mxu0 0.0
  %279 = vmatpush1.msra.mxu0 0.0
  %280 = vmatprep.subr.mxu0 0.0
  %281 = vmatpush1.msra.mxu0 0.0
  %282 = vmatprep.subr.mxu0 0.0
  %283 = vmatpush1.msra.mxu0 0.0
  %284 = vmatprep.subr.mxu0 0.0
  %285 = vmatpush1.msra.mxu0 0.0
  %286 = vmatprep.subr.mxu0 0.0
  %287 = vmatpush1.msra.mxu0 0.0
  %288 = vmatprep.subr.mxu0 0.0
  %289 = vmatpush1.msra.mxu0 0.0
  %290 = vmatprep.subr.mxu0 0.0
  %291 = vmatpush1.msra.mxu0 0.0
  %292 = vmatprep.subr.mxu0 0.0
  %293 = vmatpush1.msra.mxu0 0.0
  %294 = vmatprep.subr.mxu0 0.0
  %295 = vmatpush1.msra.mxu0 0.0
  %296 = vmatprep.subr.mxu0 0.0
  %297 = vmatpush1.msra.mxu0 0.0
  %298 = vmatprep.subr.mxu0 0.0
  %299 = vmatpush1.msra.mxu0 0.0
  %300 = vmatprep.subr.mxu0 0.0
  %301 = vmatpush1.msra.mxu0 0.0
  %302 = vmatprep.subr.mxu0 0.0
  %303 = vmatpush1.msra.mxu0 0.0
  %304 = vmatprep.subr.mxu0 0.0
  %305 = vmatpush1.msra.mxu0 0.0
  %306 = vmatprep.subr.mxu0 0.0
  %307 = vmatpush1.msra.mxu0 0.0
  %308 = vmatprep.subr.mxu0 0.0
  %309 = vmatpush1.msra.mxu0 0.0
  %310 = vmatprep.mubr.f32.mxu0 0.0
  %311 = vmatmul.mubr.f32.gmra.mrb[0].mxu0 %v240
  %v312 = vpop.f32.mrb[0].mxu0
  %v313 = vadd.f32 %v236, %v312
  %v314 = vpop.f32.mrb[0].mxu0
  %315 = vdwg.mxu0
  %v316 = vld [vmem:[%s1] sm:$0xff]
  %v317 = vld [vmem:[%s1 + $0x8] sm:$0xff]
  %v318 = vld [vmem:[%s1 + $0x10] sm:$0xff]
  %v319 = vld [vmem:[%s1 + $0x18] sm:$0xff]
  %v320 = vld [vmem:[%s1 + $0x20] sm:$0xff]
  %v321 = vld [vmem:[%s1 + $0x28] sm:$0xff]
  %v322 = vld [vmem:[%s1 + $0x30] sm:$0xff]
  %v323 = vld [vmem:[%s1 + $0x38] sm:$0xff]
  %v324 = vld [vmem:[%s6] sm:$0xf]
  %vm325 = vcmask 31744
  %v327 = vsel %vm325, %v316, 0
  %v330 = vsel %vm325, %v317, 0
  %v333 = vsel %vm325, %v318, 0
  %v336 = vsel %vm325, %v319, 0
  %v339 = vsel %vm325, %v320, 0
  %v342 = vsel %vm325, %v321, 0
  %v345 = vsel %vm325, %v322, 0
  %v348 = vsel %vm325, %v323, 0
  %vm350 = vcmask 1043456
  %v352 = vsel %vm350, %v324, 0
  %354 = vmatprep.subr.mxu0 0.0
  %355 = vmatpush1.msra.mxu0 %v352
  %356 = vmatprep.subr.mxu0 0.0
  %357 = vmatpush1.msra.mxu0 0.0
  %358 = vmatprep.subr.mxu0 0.0
  %359 = vmatpush1.msra.mxu0 0.0
  %360 = vmatprep.subr.mxu0 0.0
  %361 = vmatpush1.msra.mxu0 0.0
  %362 = vmatprep.subr.mxu0 0.0
  %363 = vmatpush1.msra.mxu0 0.0
  %364 = vmatprep.subr.mxu0 0.0
  %365 = vmatpush1.msra.mxu0 0.0
  %366 = vmatprep.subr.mxu0 0.0
  %367 = vmatpush1.msra.mxu0 0.0
  %368 = vmatprep.subr.mxu0 0.0
  %369 = vmatpush1.msra.mxu0 0.0
  %370 = vmatprep.subr.mxu0 0.0
  %371 = vmatpush1.msra.mxu0 0.0
  %372 = vmatprep.subr.mxu0 0.0
  %373 = vmatpush1.msra.mxu0 0.0
  %374 = vmatprep.subr.mxu0 0.0
  %375 = vmatpush1.msra.mxu0 0.0
  %376 = vmatprep.subr.mxu0 0.0
  %377 = vmatpush1.msra.mxu0 0.0
  %378 = vmatprep.subr.mxu0 0.0
  %379 = vmatpush1.msra.mxu0 0.0
  %380 = vmatprep.subr.mxu0 0.0
  %381 = vmatpush1.msra.mxu0 0.0
  %382 = vmatprep.subr.mxu0 0.0
  %383 = vmatpush1.msra.mxu0 0.0
  %384 = vmatprep.subr.mxu0 0.0
  %385 = vmatpush1.msra.mxu0 0.0
  %386 = vmatprep.subr.mxu0 0.0
  %387 = vmatpush1.msra.mxu0 0.0
  %388 = vmatprep.subr.mxu0 0.0
  %389 = vmatpush1.msra.mxu0 0.0
  %390 = vmatprep.subr.mxu0 0.0
  %391 = vmatpush1.msra.mxu0 0.0
  %392 = vmatprep.subr.mxu0 0.0
  %393 = vmatpush1.msra.mxu0 0.0
  %394 = vmatprep.subr.mxu0 0.0
  %395 = vmatpush1.msra.mxu0 0.0
  %396 = vmatprep.subr.mxu0 0.0
  %397 = vmatpush1.msra.mxu0 0.0
  %398 = vmatprep.subr.mxu0 0.0
  %399 = vmatpush1.msra.mxu0 0.0
  %400 = vmatprep.subr.mxu0 0.0
  %401 = vmatpush1.msra.mxu0 0.0
  %402 = vmatprep.subr.mxu0 0.0
  %403 = vmatpush1.msra.mxu0 0.0
  %404 = vmatprep.subr.mxu0 0.0
  %405 = vmatpush1.msra.mxu0 0.0
  %406 = vmatprep.subr.mxu0 0.0
  %407 = vmatpush1.msra.mxu0 0.0
  %408 = vmatprep.subr.mxu0 0.0
  %409 = vmatpush1.msra.mxu0 0.0
  %410 = vmatprep.subr.mxu0 0.0
  %411 = vmatpush1.msra.mxu0 0.0
  %412 = vmatprep.subr.mxu0 0.0
  %413 = vmatpush1.msra.mxu0 0.0
  %414 = vmatprep.subr.mxu0 0.0
  %415 = vmatpush1.msra.mxu0 0.0
  %416 = vmatprep.subr.mxu0 0.0
  %417 = vmatpush1.msra.mxu0 0.0
  %418 = vmatprep.mubr.f32.mxu0 0.0
  %419 = vmatmul.mubr.f32.gmra.mrb[0].mxu0 %v327
  %v420 = vpop.f32.mrb[0].mxu0
  %v421 = vadd.f32 %v313, %v420
  %v422 = vpop.f32.mrb[0].mxu0
  %423 = vmatprep.mubr.f32.mxu0 0.0
  %424 = vmatmul.mubr.f32.gmra.mrb[0].mxu0 %v330
  %v425 = vpop.f32.mrb[0].mxu0
  %v426 = vadd.f32 %v313, %v425
  %v427 = vpop.f32.mrb[0].mxu0
  %428 = vmatprep.mubr.f32.mxu0 0.0
  %429 = vmatmul.mubr.f32.gmra.mrb[0].mxu0 %v333
  %v430 = vpop.f32.mrb[0].mxu0
  %v431 = vadd.f32 %v313, %v430
  %v432 = vpop.f32.mrb[0].mxu0
  %433 = vmatprep.mubr.f32.mxu0 0.0
  %434 = vmatmul.mubr.f32.gmra.mrb[0].mxu0 %v336
  %v435 = vpop.f32.mrb[0].mxu0
  %v436 = vadd.f32 %v313, %v435
  %v437 = vpop.f32.mrb[0].mxu0
  %438 = vmatprep.mubr.f32.mxu0 0.0
  %439 = vmatmul.mubr.f32.gmra.mrb[0].mxu0 %v339
  %v440 = vpop.f32.mrb[0].mxu0
  %v441 = vadd.f32 %v313, %v440
  %v442 = vpop.f32.mrb[0].mxu0
  %443 = vmatprep.mubr.f32.mxu0 0.0
  %444 = vmatmul.mubr.f32.gmra.mrb[0].mxu0 %v342
  %v445 = vpop.f32.mrb[0].mxu0
  %v446 = vadd.f32 %v313, %v445
  %v447 = vpop.f32.mrb[0].mxu0
  %448 = vmatprep.mubr.f32.mxu0 0.0
  %449 = vmatmul.mubr.f32.gmra.mrb[0].mxu0 %v345
  %v450 = vpop.f32.mrb[0].mxu0
  %v451 = vadd.f32 %v313, %v450
  %v452 = vpop.f32.mrb[0].mxu0
  %453 = vmatprep.mubr.f32.mxu0 0.0
  %454 = vmatmul.mubr.f32.gmra.mrb[0].mxu0 %v348
  %v455 = vpop.f32.mrb[0].mxu0
  %v456 = vadd.f32 %v313, %v455
  %v457 = vpop.f32.mrb[0].mxu0
  %458 = vdwg.mxu0
  %v459 = vmax.f32 %v421, 0.0
  %v460 = vmax.f32 %v426, 0.0
  %v461 = vmax.f32 %v431, 0.0
  %v462 = vmax.f32 %v436, 0.0
  %v463 = vmax.f32 %v441, 0.0
  %v464 = vmax.f32 %v446, 0.0
  %v465 = vmax.f32 %v451, 0.0
  %v466 = vmax.f32 %v456, 0.0
  %v467 = vld [vmem:[%s9] sm:$0xff]
  %v468 = vld [vmem:[%s9 + $0x8] sm:$0xff]
  %v469 = vld [vmem:[%s9 + $0x10] sm:$0xff]
  %v470 = vld [vmem:[%s9 + $0x18] sm:$0xff]
  %v471 = vld [vmem:[%s11] sm:$0x1]
  %v473 = vlaneseq
  %v474 = vshrl.u32 %v473, 7
  %v475 = vsub.s32 0, %v474
  %v476 = vrot.slane %v471, %v475
  %vm478 = vcmask 261120
  %v480 = vsel %vm478, %v459, 0
  %v483 = vsel %vm478, %v460, 0
  %v486 = vsel %vm478, %v461, 0
  %v489 = vsel %vm478, %v462, 0
  %v492 = vsel %vm478, %v463, 0
  %v495 = vsel %vm478, %v464, 0
  %v498 = vsel %vm478, %v465, 0
  %v501 = vsel %vm478, %v466, 0
  %503 = vmatprep.subr.mxu0 0.0
  %504 = vmatpush1.msra.mxu0 %v467
  %505 = vmatprep.subr.mxu0 0.0
  %506 = vmatpush1.msra.mxu0 %v468
  %507 = vmatprep.subr.mxu0 0.0
  %508 = vmatpush1.msra.mxu0 %v469
  %509 = vmatprep.subr.mxu0 0.0
  %510 = vmatpush1.msra.mxu0 %v470
  %511 = vmatprep.subr.mxu0 0.0
  %512 = vmatpush1.msra.mxu0 0.0
  %513 = vmatprep.subr.mxu0 0.0
  %514 = vmatpush1.msra.mxu0 0.0
  %515 = vmatprep.subr.mxu0 0.0
  %516 = vmatpush1.msra.mxu0 0.0
  %517 = vmatprep.subr.mxu0 0.0
  %518 = vmatpush1.msra.mxu0 0.0
  %519 = vmatprep.subr.mxu0 0.0
  %520 = vmatpush1.msra.mxu0 0.0
  %521 = vmatprep.subr.mxu0 0.0
  %522 = vmatpush1.msra.mxu0 0.0
  %523 = vmatprep.subr.mxu0 0.0
  %524 = vmatpush1.msra.mxu0 0.0
  %525 = vmatprep.subr.mxu0 0.0
  %526 = vmatpush1.msra.mxu0 0.0
  %527 = vmatprep.subr.mxu0 0.0
  %528 = vmatpush1.msra.mxu0 0.0
  %529 = vmatprep.subr.mxu0 0.0
  %530 = vmatpush1.msra.mxu0 0.0
  %531 = vmatprep.subr.mxu0 0.0
  %532 = vmatpush1.msra.mxu0 0.0
  %533 = vmatprep.subr.mxu0 0.0
  %534 = vmatpush1.msra.mxu0 0.0
  %535 = vmatprep.subr.mxu0 0.0
  %536 = vmatpush1.msra.mxu0 0.0
  %537 = vmatprep.subr.mxu0 0.0
  %538 = vmatpush1.msra.mxu0 0.0
  %539 = vmatprep.subr.mxu0 0.0
  %540 = vmatpush1.msra.mxu0 0.0
  %541 = vmatprep.subr.mxu0 0.0
  %542 = vmatpush1.msra.mxu0 0.0
  %543 = vmatprep.subr.mxu0 0.0
  %544 = vmatpush1.msra.mxu0 0.0
  %545 = vmatprep.subr.mxu0 0.0
  %546 = vmatpush1.msra.mxu0 0.0
  %547 = vmatprep.subr.mxu0 0.0
  %548 = vmatpush1.msra.mxu0 0.0
  %549 = vmatprep.subr.mxu0 0.0
  %550 = vmatpush1.msra.mxu0 0.0
  %551 = vmatprep.subr.mxu0 0.0
  %552 = vmatpush1.msra.mxu0 0.0
  %553 = vmatprep.subr.mxu0 0.0
  %554 = vmatpush1.msra.mxu0 0.0
  %555 = vmatprep.subr.mxu0 0.0
  %556 = vmatpush1.msra.mxu0 0.0
  %557 = vmatprep.subr.mxu0 0.0
  %558 = vmatpush1.msra.mxu0 0.0
  %559 = vmatprep.subr.mxu0 0.0
  %560 = vmatpush1.msra.mxu0 0.0
  %561 = vmatprep.subr.mxu0 0.0
  %562 = vmatpush1.msra.mxu0 0.0
  %563 = vmatprep.subr.mxu0 0.0
  %564 = vmatpush1.msra.mxu0 0.0
  %565 = vmatprep.subr.mxu0 0.0
  %566 = vmatpush1.msra.mxu0 0.0
  %567 = vmatprep.mubr.f32.mxu0 0.0
  %568 = vmatmul.mubr.f32.gmra.mrb[0].mxu0 %v480
  %v569 = vpop.f32.mrb[0].mxu0
  %v570 = vadd.f32 %v476, %v569
  %v571 = vpop.f32.mrb[0].mxu0
  %572 = vmatprep.mubr.f32.mxu0 0.0
  %573 = vmatmul.mubr.f32.gmra.mrb[0].mxu0 %v483
  %v574 = vpop.f32.mrb[0].mxu0
  %v575 = vadd.f32 %v476, %v574
  %v576 = vpop.f32.mrb[0].mxu0
  %577 = vmatprep.mubr.f32.mxu0 0.0
  %578 = vmatmul.mubr.f32.gmra.mrb[0].mxu0 %v486
  %v579 = vpop.f32.mrb[0].mxu0
  %v580 = vadd.f32 %v476, %v579
  %v581 = vpop.f32.mrb[0].mxu0
  %582 = vmatprep.mubr.f32.mxu0 0.0
  %583 = vmatmul.mubr.f32.gmra.mrb[0].mxu0 %v489
  %v584 = vpop.f32.mrb[0].mxu0
  %v585 = vadd.f32 %v476, %v584
  %v586 = vpop.f32.mrb[0].mxu0
  %587 = vmatprep.mubr.f32.mxu0 0.0
  %588 = vmatmul.mubr.f32.gmra.mrb[0].mxu0 %v492
  %v589 = vpop.f32.mrb[0].mxu0
  %v590 = vadd.f32 %v476, %v589
  %v591 = vpop.f32.mrb[0].mxu0
  %592 = vmatprep.mubr.f32.mxu0 0.0
  %593 = vmatmul.mubr.f32.gmra.mrb[0].mxu0 %v495
  %v594 = vpop.f32.mrb[0].mxu0
  %v595 = vadd.f32 %v476, %v594
  %v596 = vpop.f32.mrb[0].mxu0
  %597 = vmatprep.mubr.f32.mxu0 0.0
  %598 = vmatmul.mubr.f32.gmra.mrb[0].mxu0 %v498
  %v599 = vpop.f32.mrb[0].mxu0
  %v600 = vadd.f32 %v476, %v599
  %v601 = vpop.f32.mrb[0].mxu0
  %602 = vmatprep.mubr.f32.mxu0 0.0
  %603 = vmatmul.mubr.f32.gmra.mrb[0].mxu0 %v501
  %v604 = vpop.f32.mrb[0].mxu0
  %v605 = vadd.f32 %v476, %v604
  %v606 = vpop.f32.mrb[0].mxu0
  %607 = vdwg.mxu0
  %v608 = vld [vmem:[%s10] sm:$0xff]
  %v609 = vld [vmem:[%s10 + $0x8] sm:$0xff]
  %v610 = vld [vmem:[%s10 + $0x10] sm:$0xff]
  %v611 = vld [vmem:[%s10 + $0x18] sm:$0xff]
  %v613 = vsel %vm478, 0.0, 0
  %615 = vmatprep.subr.mxu0 0.0
  %616 = vmatpush1.msra.mxu0 %v608
  %617 = vmatprep.subr.mxu0 0.0
  %618 = vmatpush1.msra.mxu0 %v609
  %619 = vmatprep.subr.mxu0 0.0
  %620 = vmatpush1.msra.mxu0 %v610
  %621 = vmatprep.subr.mxu0 0.0
  %622 = vmatpush1.msra.mxu0 %v611
  %623 = vmatprep.subr.mxu0 0.0
  %624 = vmatpush1.msra.mxu0 0.0
  %625 = vmatprep.subr.mxu0 0.0
  %626 = vmatpush1.msra.mxu0 0.0
  %627 = vmatprep.subr.mxu0 0.0
  %628 = vmatpush1.msra.mxu0 0.0
  %629 = vmatprep.subr.mxu0 0.0
  %630 = vmatpush1.msra.mxu0 0.0
  %631 = vmatprep.subr.mxu0 0.0
  %632 = vmatpush1.msra.mxu0 0.0
  %633 = vmatprep.subr.mxu0 0.0
  %634 = vmatpush1.msra.mxu0 0.0
  %635 = vmatprep.subr.mxu0 0.0
  %636 = vmatpush1.msra.mxu0 0.0
  %637 = vmatprep.subr.mxu0 0.0
  %638 = vmatpush1.msra.mxu0 0.0
  %639 = vmatprep.subr.mxu0 0.0
  %640 = vmatpush1.msra.mxu0 0.0
  %641 = vmatprep.subr.mxu0 0.0
  %642 = vmatpush1.msra.mxu0 0.0
  %643 = vmatprep.subr.mxu0 0.0
  %644 = vmatpush1.msra.mxu0 0.0
  %645 = vmatprep.subr.mxu0 0.0
  %646 = vmatpush1.msra.mxu0 0.0
  %647 = vmatprep.subr.mxu0 0.0
  %648 = vmatpush1.msra.mxu0 0.0
  %649 = vmatprep.subr.mxu0 0.0
  %650 = vmatpush1.msra.mxu0 0.0
  %651 = vmatprep.subr.mxu0 0.0
  %652 = vmatpush1.msra.mxu0 0.0
  %653 = vmatprep.subr.mxu0 0.0
  %654 = vmatpush1.msra.mxu0 0.0
  %655 = vmatprep.subr.mxu0 0.0
  %656 = vmatpush1.msra.mxu0 0.0
  %657 = vmatprep.subr.mxu0 0.0
  %658 = vmatpush1.msra.mxu0 0.0
  %659 = vmatprep.subr.mxu0 0.0
  %660 = vmatpush1.msra.mxu0 0.0
  %661 = vmatprep.subr.mxu0 0.0
  %662 = vmatpush1.msra.mxu0 0.0
  %663 = vmatprep.subr.mxu0 0.0
  %664 = vmatpush1.msra.mxu0 0.0
  %665 = vmatprep.subr.mxu0 0.0
  %666 = vmatpush1.msra.mxu0 0.0
  %667 = vmatprep.subr.mxu0 0.0
  %668 = vmatpush1.msra.mxu0 0.0
  %669 = vmatprep.subr.mxu0 0.0
  %670 = vmatpush1.msra.mxu0 0.0
  %671 = vmatprep.subr.mxu0 0.0
  %672 = vmatpush1.msra.mxu0 0.0
  %673 = vmatprep.subr.mxu0 0.0
  %674 = vmatpush1.msra.mxu0 0.0
  %675 = vmatprep.subr.mxu0 0.0
  %676 = vmatpush1.msra.mxu0 0.0
  %677 = vmatprep.subr.mxu0 0.0
  %678 = vmatpush1.msra.mxu0 0.0
  %679 = vmatprep.mubr.f32.mxu0 0.0
  %680 = vmatmul.mubr.f32.gmra.mrb[0].mxu0 %v613
  %v681 = vpop.f32.mrb[0].mxu0
  %v682 = vadd.f32 0.0, %v681
  %v683 = vpop.f32.mrb[0].mxu0
  %684 = vdwg.mxu0
  %v685 = vadd.f32 %v570, %v682
  %v686 = vmul.f32 %v685, 0.5
  %v687 = vtanh.pop %v686
  %v688 = vadd.f32 %v687, 1.0
  %v689 = vmul.f32 %v688, 0.5
  %v690 = vtanh.pop %v685
  %v691 = vmul.f32 %v689, 0.0
  %693 = vrot.lane.b32.xlu0 %v690, 64
  %v694 = vpop.permute.xlu0 %693
  %v696 = vmul.f32 %v689, %v694
  %698 = vrot.lane.b32.xlu0 %v696, 32
  %v699 = vpop.permute.xlu0 %698
  %v701 = vadd.f32 %v691, %v699
  %v702 = vtanh.pop %v701
  %704 = vrot.lane.b32.xlu0 %v702, 64
  %v705 = vpop.permute.xlu0 %704
  %v707 = vmul.f32 %v689, %v705
  %709 = vrot.lane.b32.xlu0 %v707, 32
  %v710 = vpop.permute.xlu0 %709
  %v711 = vsel %vm478, %v710, 0
  %713 = vmatprep.subr.mxu0 0.0
  %714 = vmatpush1.msra.mxu0 %v608
  %715 = vmatprep.subr.mxu0 0.0
  %716 = vmatpush1.msra.mxu0 %v609
  %717 = vmatprep.subr.mxu0 0.0
  %718 = vmatpush1.msra.mxu0 %v610
  %719 = vmatprep.subr.mxu0 0.0
  %720 = vmatpush1.msra.mxu0 %v611
  %721 = vmatprep.subr.mxu0 0.0
  %722 = vmatpush1.msra.mxu0 0.0
  %723 = vmatprep.subr.mxu0 0.0
  %724 = vmatpush1.msra.mxu0 0.0
  %725 = vmatprep.subr.mxu0 0.0
  %726 = vmatpush1.msra.mxu0 0.0
  %727 = vmatprep.subr.mxu0 0.0
  %728 = vmatpush1.msra.mxu0 0.0
  %729 = vmatprep.subr.mxu0 0.0
  %730 = vmatpush1.msra.mxu0 0.0
  %731 = vmatprep.subr.mxu0 0.0
  %732 = vmatpush1.msra.mxu0 0.0
  %733 = vmatprep.subr.mxu0 0.0
  %734 = vmatpush1.msra.mxu0 0.0
  %735 = vmatprep.subr.mxu0 0.0
  %736 = vmatpush1.msra.mxu0 0.0
  %737 = vmatprep.subr.mxu0 0.0
  %738 = vmatpush1.msra.mxu0 0.0
  %739 = vmatprep.subr.mxu0 0.0
  %740 = vmatpush1.msra.mxu0 0.0
  %741 = vmatprep.subr.mxu0 0.0
  %742 = vmatpush1.msra.mxu0 0.0
  %743 = vmatprep.subr.mxu0 0.0
  %744 = vmatpush1.msra.mxu0 0.0
  %745 = vmatprep.subr.mxu0 0.0
  %746 = vmatpush1.msra.mxu0 0.0
  %747 = vmatprep.subr.mxu0 0.0
  %748 = vmatpush1.msra.mxu0 0.0
  %749 = vmatprep.subr.mxu0 0.0
  %750 = vmatpush1.msra.mxu0 0.0
  %751 = vmatprep.subr.mxu0 0.0
  %752 = vmatpush1.msra.mxu0 0.0
  %753 = vmatprep.subr.mxu0 0.0
  %754 = vmatpush1.msra.mxu0 0.0
  %755 = vmatprep.subr.mxu0 0.0
  %756 = vmatpush1.msra.mxu0 0.0
  %757 = vmatprep.subr.mxu0 0.0
  %758 = vmatpush1.msra.mxu0 0.0
  %759 = vmatprep.subr.mxu0 0.0
  %760 = vmatpush1.msra.mxu0 0.0
  %761 = vmatprep.subr.mxu0 0.0
  %762 = vmatpush1.msra.mxu0 0.0
  %763 = vmatprep.subr.mxu0 0.0
  %764 = vmatpush1.msra.mxu0 0.0
  %765 = vmatprep.subr.mxu0 0.0
  %766 = vmatpush1.msra.mxu0 0.0
  %767 = vmatprep.subr.mxu0 0.0
  %768 = vmatpush1.msra.mxu0 0.0
  %769 = vmatprep.subr.mxu0 0.0
  %770 = vmatpush1.msra.mxu0 0.0
  %771 = vmatprep.subr.mxu0 0.0
  %772 = vmatpush1.msra.mxu0 0.0
  %773 = vmatprep.subr.mxu0 0.0
  %774 = vmatpush1.msra.mxu0 0.0
  %775 = vmatprep.subr.mxu0 0.0
  %776 = vmatpush1.msra.mxu0 0.0
  %777 = vmatprep.mubr.f32.mxu0 0.0
  %778 = vmatmul.mubr.f32.gmra.mrb[0].mxu0 %v711
  %v779 = vpop.f32.mrb[0].mxu0
  %v780 = vadd.f32 0.0, %v779
  %v781 = vpop.f32.mrb[0].mxu0
  %782 = vdwg.mxu0
  %v783 = vadd.f32 %v575, %v780
  %v784 = vmul.f32 %v783, 0.5
  %v785 = vtanh.pop %v784
  %v786 = vadd.f32 %v785, 1.0
  %v787 = vmul.f32 %v786, 0.5
  %v788 = vtanh.pop %v783
  %v789 = vmul.f32 %v787, %v701
  %791 = vrot.lane.b32.xlu0 %v788, 64
  %v792 = vpop.permute.xlu0 %791
  %v794 = vmul.f32 %v787, %v792
  %796 = vrot.lane.b32.xlu0 %v794, 32
  %v797 = vpop.permute.xlu0 %796
  %v799 = vadd.f32 %v789, %v797
  %v800 = vtanh.pop %v799
  %802 = vrot.lane.b32.xlu0 %v800, 64
  %v803 = vpop.permute.xlu0 %802
  %v805 = vmul.f32 %v787, %v803
  %807 = vrot.lane.b32.xlu0 %v805, 32
  %v808 = vpop.permute.xlu0 %807
  %v809 = vsel %vm478, %v808, 0
  %811 = vmatprep.subr.mxu0 0.0
  %812 = vmatpush1.msra.mxu0 %v608
  %813 = vmatprep.subr.mxu0 0.0
  %814 = vmatpush1.msra.mxu0 %v609
  %815 = vmatprep.subr.mxu0 0.0
  %816 = vmatpush1.msra.mxu0 %v610
  %817 = vmatprep.subr.mxu0 0.0
  %818 = vmatpush1.msra.mxu0 %v611
  %819 = vmatprep.subr.mxu0 0.0
  %820 = vmatpush1.msra.mxu0 0.0
  %821 = vmatprep.subr.mxu0 0.0
  %822 = vmatpush1.msra.mxu0 0.0
  %823 = vmatprep.subr.mxu0 0.0
  %824 = vmatpush1.msra.mxu0 0.0
  %825 = vmatprep.subr.mxu0 0.0
  %826 = vmatpush1.msra.mxu0 0.0
  %827 = vmatprep.subr.mxu0 0.0
  %828 = vmatpush1.msra.mxu0 0.0
  %829 = vmatprep.subr.mxu0 0.0
  %830 = vmatpush1.msra.mxu0 0.0
  %831 = vmatprep.subr.mxu0 0.0
  %832 = vmatpush1.msra.mxu0 0.0
  %833 = vmatprep.subr.mxu0 0.0
  %834 = vmatpush1.msra.mxu0 0.0
  %835 = vmatprep.subr.mxu0 0.0
  %836 = vmatpush1.msra.mxu0 0.0
  %837 = vmatprep.subr.mxu0 0.0
  %838 = vmatpush1.msra.mxu0 0.0
  %839 = vmatprep.subr.mxu0 0.0
  %840 = vmatpush1.msra.mxu0 0.0
  %841 = vmatprep.subr.mxu0 0.0
  %842 = vmatpush1.msra.mxu0 0.0
  %843 = vmatprep.subr.mxu0 0.0
  %844 = vmatpush1.msra.mxu0 0.0
  %845 = vmatprep.subr.mxu0 0.0
  %846 = vmatpush1.msra.mxu0 0.0
  %847 = vmatprep.subr.mxu0 0.0
  %848 = vmatpush1.msra.mxu0 0.0
  %849 = vmatprep.subr.mxu0 0.0
  %850 = vmatpush1.msra.mxu0 0.0
  %851 = vmatprep.subr.mxu0 0.0
  %852 = vmatpush1.msra.mxu0 0.0
  %853 = vmatprep.subr.mxu0 0.0
  %854 = vmatpush1.msra.mxu0 0.0
  %855 = vmatprep.subr.mxu0 0.0
  %856 = vmatpush1.msra.mxu0 0.0
  %857 = vmatprep.subr.mxu0 0.0
  %858 = vmatpush1.msra.mxu0 0.0
  %859 = vmatprep.subr.mxu0 0.0
  %860 = vmatpush1.msra.mxu0 0.0
  %861 = vmatprep.subr.mxu0 0.0
  %862 = vmatpush1.msra.mxu0 0.0
  %863 = vmatprep.subr.mxu0 0.0
  %864 = vmatpush1.msra.mxu0 0.0
  %865 = vmatprep.subr.mxu0 0.0
  %866 = vmatpush1.msra.mxu0 0.0
  %867 = vmatprep.subr.mxu0 0.0
  %868 = vmatpush1.msra.mxu0 0.0
  %869 = vmatprep.subr.mxu0 0.0
  %870 = vmatpush1.msra.mxu0 0.0
  %871 = vmatprep.subr.mxu0 0.0
  %872 = vmatpush1.msra.mxu0 0.0
  %873 = vmatprep.subr.mxu0 0.0
  %874 = vmatpush1.msra.mxu0 0.0
  %875 = vmatprep.mubr.f32.mxu0 0.0
  %876 = vmatmul.mubr.f32.gmra.mrb[0].mxu0 %v809
  %v877 = vpop.f32.mrb[0].mxu0
  %v878 = vadd.f32 0.0, %v877
  %v879 = vpop.f32.mrb[0].mxu0
  %880 = vdwg.mxu0
  %v881 = vadd.f32 %v580, %v878
  %v882 = vmul.f32 %v881, 0.5
  %v883 = vtanh.pop %v882
  %v884 = vadd.f32 %v883, 1.0
  %v885 = vmul.f32 %v884, 0.5
  %v886 = vtanh.pop %v881
  %v887 = vmul.f32 %v885, %v799
  %889 = vrot.lane.b32.xlu0 %v886, 64
  %v890 = vpop.permute.xlu0 %889
  %v892 = vmul.f32 %v885, %v890
  %894 = vrot.lane.b32.xlu0 %v892, 32
  %v895 = vpop.permute.xlu0 %894
  %v897 = vadd.f32 %v887, %v895
  %v898 = vtanh.pop %v897
  %900 = vrot.lane.b32.xlu0 %v898, 64
  %v901 = vpop.permute.xlu0 %900
  %v903 = vmul.f32 %v885, %v901
  %905 = vrot.lane.b32.xlu0 %v903, 32
  %v906 = vpop.permute.xlu0 %905
  %v907 = vsel %vm478, %v906, 0
  %909 = vmatprep.subr.mxu0 0.0
  %910 = vmatpush1.msra.mxu0 %v608
  %911 = vmatprep.subr.mxu0 0.0
  %912 = vmatpush1.msra.mxu0 %v609
  %913 = vmatprep.subr.mxu0 0.0
  %914 = vmatpush1.msra.mxu0 %v610
  %915 = vmatprep.subr.mxu0 0.0
  %916 = vmatpush1.msra.mxu0 %v611
  %917 = vmatprep.subr.mxu0 0.0
  %918 = vmatpush1.msra.mxu0 0.0
  %919 = vmatprep.subr.mxu0 0.0
  %920 = vmatpush1.msra.mxu0 0.0
  %921 = vmatprep.subr.mxu0 0.0
  %922 = vmatpush1.msra.mxu0 0.0
  %923 = vmatprep.subr.mxu0 0.0
  %924 = vmatpush1.msra.mxu0 0.0
  %925 = vmatprep.subr.mxu0 0.0
  %926 = vmatpush1.msra.mxu0 0.0
  %927 = vmatprep.subr.mxu0 0.0
  %928 = vmatpush1.msra.mxu0 0.0
  %929 = vmatprep.subr.mxu0 0.0
  %930 = vmatpush1.msra.mxu0 0.0
  %931 = vmatprep.subr.mxu0 0.0
  %932 = vmatpush1.msra.mxu0 0.0
  %933 = vmatprep.subr.mxu0 0.0
  %934 = vmatpush1.msra.mxu0 0.0
  %935 = vmatprep.subr.mxu0 0.0
  %936 = vmatpush1.msra.mxu0 0.0
  %937 = vmatprep.subr.mxu0 0.0
  %938 = vmatpush1.msra.mxu0 0.0
  %939 = vmatprep.subr.mxu0 0.0
  %940 = vmatpush1.msra.mxu0 0.0
  %941 = vmatprep.subr.mxu0 0.0
  %942 = vmatpush1.msra.mxu0 0.0
  %943 = vmatprep.subr.mxu0 0.0
  %944 = vmatpush1.msra.mxu0 0.0
  %945 = vmatprep.subr.mxu0 0.0
  %946 = vmatpush1.msra.mxu0 0.0
  %947 = vmatprep.subr.mxu0 0.0
  %948 = vmatpush1.msra.mxu0 0.0
  %949 = vmatprep.subr.mxu0 0.0
  %950 = vmatpush1.msra.mxu0 0.0
  %951 = vmatprep.subr.mxu0 0.0
  %952 = vmatpush1.msra.mxu0 0.0
  %953 = vmatprep.subr.mxu0 0.0
  %954 = vmatpush1.msra.mxu0 0.0
  %955 = vmatprep.subr.mxu0 0.0
  %956 = vmatpush1.msra.mxu0 0.0
  %957 = vmatprep.subr.mxu0 0.0
  %958 = vmatpush1.msra.mxu0 0.0
  %959 = vmatprep.subr.mxu0 0.0
  %960 = vmatpush1.msra.mxu0 0.0
  %961 = vmatprep.subr.mxu0 0.0
  %962 = vmatpush1.msra.mxu0 0.0
  %963 = vmatprep.subr.mxu0 0.0
  %964 = vmatpush1.msra.mxu0 0.0
  %965 = vmatprep.subr.mxu0 0.0
  %966 = vmatpush1.msra.mxu0 0.0
  %967 = vmatprep.subr.mxu0 0.0
  %968 = vmatpush1.msra.mxu0 0.0
  %969 = vmatprep.subr.mxu0 0.0
  %970 = vmatpush1.msra.mxu0 0.0
  %971 = vmatprep.subr.mxu0 0.0
  %972 = vmatpush1.msra.mxu0 0.0
  %973 = vmatprep.mubr.f32.mxu0 0.0
  %974 = vmatmul.mubr.f32.gmra.mrb[0].mxu0 %v907
  %v975 = vpop.f32.mrb[0].mxu0
  %v976 = vadd.f32 0.0, %v975
  %v977 = vpop.f32.mrb[0].mxu0
  %978 = vdwg.mxu0
  %v979 = vadd.f32 %v585, %v976
  %v980 = vmul.f32 %v979, 0.5
  %v981 = vtanh.pop %v980
  %v982 = vadd.f32 %v981, 1.0
  %v983 = vmul.f32 %v982, 0.5
  %v984 = vtanh.pop %v979
  %v985 = vmul.f32 %v983, %v897
  %987 = vrot.lane.b32.xlu0 %v984, 64
  %v988 = vpop.permute.xlu0 %987
  %v990 = vmul.f32 %v983, %v988
  %992 = vrot.lane.b32.xlu0 %v990, 32
  %v993 = vpop.permute.xlu0 %992
  %v995 = vadd.f32 %v985, %v993
  %v996 = vtanh.pop %v995
  %998 = vrot.lane.b32.xlu0 %v996, 64
  %v999 = vpop.permute.xlu0 %998
  %v1001 = vmul.f32 %v983, %v999
  %1003 = vrot.lane.b32.xlu0 %v1001, 32
  %v1004 = vpop.permute.xlu0 %1003
  %v1005 = vsel %vm478, %v1004, 0
  %1007 = vmatprep.subr.mxu0 0.0
  %1008 = vmatpush1.msra.mxu0 %v608
  %1009 = vmatprep.subr.mxu0 0.0
  %1010 = vmatpush1.msra.mxu0 %v609
  %1011 = vmatprep.subr.mxu0 0.0
  %1012 = vmatpush1.msra.mxu0 %v610
  %1013 = vmatprep.subr.mxu0 0.0
  %1014 = vmatpush1.msra.mxu0 %v611
  %1015 = vmatprep.subr.mxu0 0.0
  %1016 = vmatpush1.msra.mxu0 0.0
  %1017 = vmatprep.subr.mxu0 0.0
  %1018 = vmatpush1.msra.mxu0 0.0
  %1019 = vmatprep.subr.mxu0 0.0
  %1020 = vmatpush1.msra.mxu0 0.0
  %1021 = vmatprep.subr.mxu0 0.0
  %1022 = vmatpush1.msra.mxu0 0.0
  %1023 = vmatprep.subr.mxu0 0.0
  %1024 = vmatpush1.msra.mxu0 0.0
  %1025 = vmatprep.subr.mxu0 0.0
  %1026 = vmatpush1.msra.mxu0 0.0
  %1027 = vmatprep.subr.mxu0 0.0
  %1028 = vmatpush1.msra.mxu0 0.0
  %1029 = vmatprep.subr.mxu0 0.0
  %1030 = vmatpush1.msra.mxu0 0.0
  %1031 = vmatprep.subr.mxu0 0.0
  %1032 = vmatpush1.msra.mxu0 0.0
  %1033 = vmatprep.subr.mxu0 0.0
  %1034 = vmatpush1.msra.mxu0 0.0
  %1035 = vmatprep.subr.mxu0 0.0
  %1036 = vmatpush1.msra.mxu0 0.0
  %1037 = vmatprep.subr.mxu0 0.0
  %1038 = vmatpush1.msra.mxu0 0.0
  %1039 = vmatprep.subr.mxu0 0.0
  %1040 = vmatpush1.msra.mxu0 0.0
  %1041 = vmatprep.subr.mxu0 0.0
  %1042 = vmatpush1.msra.mxu0 0.0
  %1043 = vmatprep.subr.mxu0 0.0
  %1044 = vmatpush1.msra.mxu0 0.0
  %1045 = vmatprep.subr.mxu0 0.0
  %1046 = vmatpush1.msra.mxu0 0.0
  %1047 = vmatprep.subr.mxu0 0.0
  %1048 = vmatpush1.msra.mxu0 0.0
  %1049 = vmatprep.subr.mxu0 0.0
  %1050 = vmatpush1.msra.mxu0 0.0
  %1051 = vmatprep.subr.mxu0 0.0
  %1052 = vmatpush1.msra.mxu0 0.0
  %1053 = vmatprep.subr.mxu0 0.0
  %1054 = vmatpush1.msra.mxu0 0.0
  %1055 = vmatprep.subr.mxu0 0.0
  %1056 = vmatpush1.msra.mxu0 0.0
  %1057 = vmatprep.subr.mxu0 0.0
  %1058 = vmatpush1.msra.mxu0 0.0
  %1059 = vmatprep.subr.mxu0 0.0
  %1060 = vmatpush1.msra.mxu0 0.0
  %1061 = vmatprep.subr.mxu0 0.0
  %1062 = vmatpush1.msra.mxu0 0.0
  %1063 = vmatprep.subr.mxu0 0.0
  %1064 = vmatpush1.msra.mxu0 0.0
  %1065 = vmatprep.subr.mxu0 0.0
  %1066 = vmatpush1.msra.mxu0 0.0
  %1067 = vmatprep.subr.mxu0 0.0
  %1068 = vmatpush1.msra.mxu0 0.0
  %1069 = vmatprep.subr.mxu0 0.0
  %1070 = vmatpush1.msra.mxu0 0.0
  %1071 = vmatprep.mubr.f32.mxu0 0.0
  %1072 = vmatmul.mubr.f32.gmra.mrb[0].mxu0 %v1005
  %v1073 = vpop.f32.mrb[0].mxu0
  %v1074 = vadd.f32 0.0, %v1073
  %v1075 = vpop.f32.mrb[0].mxu0
  %1076 = vdwg.mxu0
  %v1077 = vadd.f32 %v590, %v1074
  %v1078 = vmul.f32 %v1077, 0.5
  %v1079 = vtanh.pop %v1078
  %v1080 = vadd.f32 %v1079, 1.0
  %v1081 = vmul.f32 %v1080, 0.5
  %v1082 = vtanh.pop %v1077
  %v1083 = vmul.f32 %v1081, %v995
  %1085 = vrot.lane.b32.xlu0 %v1082, 64
  %v1086 = vpop.permute.xlu0 %1085
  %v1088 = vmul.f32 %v1081, %v1086
  %1090 = vrot.lane.b32.xlu0 %v1088, 32
  %v1091 = vpop.permute.xlu0 %1090
  %v1093 = vadd.f32 %v1083, %v1091
  %v1094 = vtanh.pop %v1093
  %1096 = vrot.lane.b32.xlu0 %v1094, 64
  %v1097 = vpop.permute.xlu0 %1096
  %v1099 = vmul.f32 %v1081, %v1097
  %1101 = vrot.lane.b32.xlu0 %v1099, 32
  %v1102 = vpop.permute.xlu0 %1101
  %v1103 = vsel %vm478, %v1102, 0
  %1105 = vmatprep.subr.mxu0 0.0
  %1106 = vmatpush1.msra.mxu0 %v608
  %1107 = vmatprep.subr.mxu0 0.0
  %1108 = vmatpush1.msra.mxu0 %v609
  %1109 = vmatprep.subr.mxu0 0.0
  %1110 = vmatpush1.msra.mxu0 %v610
  %1111 = vmatprep.subr.mxu0 0.0
  %1112 = vmatpush1.msra.mxu0 %v611
  %1113 = vmatprep.subr.mxu0 0.0
  %1114 = vmatpush1.msra.mxu0 0.0
  %1115 = vmatprep.subr.mxu0 0.0
  %1116 = vmatpush1.msra.mxu0 0.0
  %1117 = vmatprep.subr.mxu0 0.0
  %1118 = vmatpush1.msra.mxu0 0.0
  %1119 = vmatprep.subr.mxu0 0.0
  %1120 = vmatpush1.msra.mxu0 0.0
  %1121 = vmatprep.subr.mxu0 0.0
  %1122 = vmatpush1.msra.mxu0 0.0
  %1123 = vmatprep.subr.mxu0 0.0
  %1124 = vmatpush1.msra.mxu0 0.0
  %1125 = vmatprep.subr.mxu0 0.0
  %1126 = vmatpush1.msra.mxu0 0.0
  %1127 = vmatprep.subr.mxu0 0.0
  %1128 = vmatpush1.msra.mxu0 0.0
  %1129 = vmatprep.subr.mxu0 0.0
  %1130 = vmatpush1.msra.mxu0 0.0
  %1131 = vmatprep.subr.mxu0 0.0
  %1132 = vmatpush1.msra.mxu0 0.0
  %1133 = vmatprep.subr.mxu0 0.0
  %1134 = vmatpush1.msra.mxu0 0.0
  %1135 = vmatprep.subr.mxu0 0.0
  %1136 = vmatpush1.msra.mxu0 0.0
  %1137 = vmatprep.subr.mxu0 0.0
  %1138 = vmatpush1.msra.mxu0 0.0
  %1139 = vmatprep.subr.mxu0 0.0
  %1140 = vmatpush1.msra.mxu0 0.0
  %1141 = vmatprep.subr.mxu0 0.0
  %1142 = vmatpush1.msra.mxu0 0.0
  %1143 = vmatprep.subr.mxu0 0.0
  %1144 = vmatpush1.msra.mxu0 0.0
  %1145 = vmatprep.subr.mxu0 0.0
  %1146 = vmatpush1.msra.mxu0 0.0
  %1147 = vmatprep.subr.mxu0 0.0
  %1148 = vmatpush1.msra.mxu0 0.0
  %1149 = vmatprep.subr.mxu0 0.0
  %1150 = vmatpush1.msra.mxu0 0.0
  %1151 = vmatprep.subr.mxu0 0.0
  %1152 = vmatpush1.msra.mxu0 0.0
  %1153 = vmatprep.subr.mxu0 0.0
  %1154 = vmatpush1.msra.mxu0 0.0
  %1155 = vmatprep.subr.mxu0 0.0
  %1156 = vmatpush1.msra.mxu0 0.0
  %1157 = vmatprep.subr.mxu0 0.0
  %1158 = vmatpush1.msra.mxu0 0.0
  %1159 = vmatprep.subr.mxu0 0.0
  %1160 = vmatpush1.msra.mxu0 0.0
  %1161 = vmatprep.subr.mxu0 0.0
  %1162 = vmatpush1.msra.mxu0 0.0
  %1163 = vmatprep.subr.mxu0 0.0
  %1164 = vmatpush1.msra.mxu0 0.0
  %1165 = vmatprep.subr.mxu0 0.0
  %1166 = vmatpush1.msra.mxu0 0.0
  %1167 = vmatprep.subr.mxu0 0.0
  %1168 = vmatpush1.msra.mxu0 0.0
  %1169 = vmatprep.mubr.f32.mxu0 0.0
  %1170 = vmatmul.mubr.f32.gmra.mrb[0].mxu0 %v1103
  %v1171 = vpop.f32.mrb[0].mxu0
  %v1172 = vadd.f32 0.0, %v1171
  %v1173 = vpop.f32.mrb[0].mxu0
  %1174 = vdwg.mxu0
  %v1175 = vadd.f32 %v595, %v1172
  %v1176 = vmul.f32 %v1175, 0.5
  %v1177 = vtanh.pop %v1176
  %v1178 = vadd.f32 %v1177, 1.0
  %v1179 = vmul.f32 %v1178, 0.5
  %v1180 = vtanh.pop %v1175
  %v1181 = vmul.f32 %v1179, %v1093
  %1183 = vrot.lane.b32.xlu0 %v1180, 64
  %v1184 = vpop.permute.xlu0 %1183
  %v1186 = vmul.f32 %v1179, %v1184
  %1188 = vrot.lane.b32.xlu0 %v1186, 32
  %v1189 = vpop.permute.xlu0 %1188
  %v1191 = vadd.f32 %v1181, %v1189
  %v1192 = vtanh.pop %v1191
  %1194 = vrot.lane.b32.xlu0 %v1192, 64
  %v1195 = vpop.permute.xlu0 %1194
  %v1197 = vmul.f32 %v1179, %v1195
  %1199 = vrot.lane.b32.xlu0 %v1197, 32
  %v1200 = vpop.permute.xlu0 %1199
  %v1201 = vsel %vm478, %v1200, 0
  %1203 = vmatprep.subr.mxu0 0.0
  %1204 = vmatpush1.msra.mxu0 %v608
  %1205 = vmatprep.subr.mxu0 0.0
  %1206 = vmatpush1.msra.mxu0 %v609
  %1207 = vmatprep.subr.mxu0 0.0
  %1208 = vmatpush1.msra.mxu0 %v610
  %1209 = vmatprep.subr.mxu0 0.0
  %1210 = vmatpush1.msra.mxu0 %v611
  %1211 = vmatprep.subr.mxu0 0.0
  %1212 = vmatpush1.msra.mxu0 0.0
  %1213 = vmatprep.subr.mxu0 0.0
  %1214 = vmatpush1.msra.mxu0 0.0
  %1215 = vmatprep.subr.mxu0 0.0
  %1216 = vmatpush1.msra.mxu0 0.0
  %1217 = vmatprep.subr.mxu0 0.0
  %1218 = vmatpush1.msra.mxu0 0.0
  %1219 = vmatprep.subr.mxu0 0.0
  %1220 = vmatpush1.msra.mxu0 0.0
  %1221 = vmatprep.subr.mxu0 0.0
  %1222 = vmatpush1.msra.mxu0 0.0
  %1223 = vmatprep.subr.mxu0 0.0
  %1224 = vmatpush1.msra.mxu0 0.0
  %1225 = vmatprep.subr.mxu0 0.0
  %1226 = vmatpush1.msra.mxu0 0.0
  %1227 = vmatprep.subr.mxu0 0.0
  %1228 = vmatpush1.msra.mxu0 0.0
  %1229 = vmatprep.subr.mxu0 0.0
  %1230 = vmatpush1.msra.mxu0 0.0
  %1231 = vmatprep.subr.mxu0 0.0
  %1232 = vmatpush1.msra.mxu0 0.0
  %1233 = vmatprep.subr.mxu0 0.0
  %1234 = vmatpush1.msra.mxu0 0.0
  %1235 = vmatprep.subr.mxu0 0.0
  %1236 = vmatpush1.msra.mxu0 0.0
  %1237 = vmatprep.subr.mxu0 0.0
  %1238 = vmatpush1.msra.mxu0 0.0
  %1239 = vmatprep.subr.mxu0 0.0
  %1240 = vmatpush1.msra.mxu0 0.0
  %1241 = vmatprep.subr.mxu0 0.0
  %1242 = vmatpush1.msra.mxu0 0.0
  %1243 = vmatprep.subr.mxu0 0.0
  %1244 = vmatpush1.msra.mxu0 0.0
  %1245 = vmatprep.subr.mxu0 0.0
  %1246 = vmatpush1.msra.mxu0 0.0
  %1247 = vmatprep.subr.mxu0 0.0
  %1248 = vmatpush1.msra.mxu0 0.0
  %1249 = vmatprep.subr.mxu0 0.0
  %1250 = vmatpush1.msra.mxu0 0.0
  %1251 = vmatprep.subr.mxu0 0.0
  %1252 = vmatpush1.msra.mxu0 0.0
  %1253 = vmatprep.subr.mxu0 0.0
  %1254 = vmatpush1.msra.mxu0 0.0
  %1255 = vmatprep.subr.mxu0 0.0
  %1256 = vmatpush1.msra.mxu0 0.0
  %1257 = vmatprep.subr.mxu0 0.0
  %1258 = vmatpush1.msra.mxu0 0.0
  %1259 = vmatprep.subr.mxu0 0.0
  %1260 = vmatpush1.msra.mxu0 0.0
  %1261 = vmatprep.subr.mxu0 0.0
  %1262 = vmatpush1.msra.mxu0 0.0
  %1263 = vmatprep.subr.mxu0 0.0
  %1264 = vmatpush1.msra.mxu0 0.0
  %1265 = vmatprep.subr.mxu0 0.0
  %1266 = vmatpush1.msra.mxu0 0.0
  %1267 = vmatprep.mubr.f32.mxu0 0.0
  %1268 = vmatmul.mubr.f32.gmra.mrb[0].mxu0 %v1201
  %v1269 = vpop.f32.mrb[0].mxu0
  %v1270 = vadd.f32 0.0, %v1269
  %v1271 = vpop.f32.mrb[0].mxu0
  %1272 = vdwg.mxu0
  %v1273 = vadd.f32 %v600, %v1270
  %v1274 = vmul.f32 %v1273, 0.5
  %v1275 = vtanh.pop %v1274
  %v1276 = vadd.f32 %v1275, 1.0
  %v1277 = vmul.f32 %v1276, 0.5
  %v1278 = vtanh.pop %v1273
  %v1279 = vmul.f32 %v1277, %v1191
  %1281 = vrot.lane.b32.xlu0 %v1278, 64
  %v1282 = vpop.permute.xlu0 %1281
  %v1284 = vmul.f32 %v1277, %v1282
  %1286 = vrot.lane.b32.xlu0 %v1284, 32
  %v1287 = vpop.permute.xlu0 %1286
  %v1289 = vadd.f32 %v1279, %v1287
  %v1290 = vtanh.pop %v1289
  %1292 = vrot.lane.b32.xlu0 %v1290, 64
  %v1293 = vpop.permute.xlu0 %1292
  %v1295 = vmul.f32 %v1277, %v1293
  %1297 = vrot.lane.b32.xlu0 %v1295, 32
  %v1298 = vpop.permute.xlu0 %1297
  %v1299 = vsel %vm478, %v1298, 0
  %1301 = vmatprep.subr.mxu0 0.0
  %1302 = vmatpush1.msra.mxu0 %v608
  %1303 = vmatprep.subr.mxu0 0.0
  %1304 = vmatpush1.msra.mxu0 %v609
  %1305 = vmatprep.subr.mxu0 0.0
  %1306 = vmatpush1.msra.mxu0 %v610
  %1307 = vmatprep.subr.mxu0 0.0
  %1308 = vmatpush1.msra.mxu0 %v611
  %1309 = vmatprep.subr.mxu0 0.0
  %1310 = vmatpush1.msra.mxu0 0.0
  %1311 = vmatprep.subr.mxu0 0.0
  %1312 = vmatpush1.msra.mxu0 0.0
  %1313 = vmatprep.subr.mxu0 0.0
  %1314 = vmatpush1.msra.mxu0 0.0
  %1315 = vmatprep.subr.mxu0 0.0
  %1316 = vmatpush1.msra.mxu0 0.0
  %1317 = vmatprep.subr.mxu0 0.0
  %1318 = vmatpush1.msra.mxu0 0.0
  %1319 = vmatprep.subr.mxu0 0.0
  %1320 = vmatpush1.msra.mxu0 0.0
  %1321 = vmatprep.subr.mxu0 0.0
  %1322 = vmatpush1.msra.mxu0 0.0
  %1323 = vmatprep.subr.mxu0 0.0
  %1324 = vmatpush1.msra.mxu0 0.0
  %1325 = vmatprep.subr.mxu0 0.0
  %1326 = vmatpush1.msra.mxu0 0.0
  %1327 = vmatprep.subr.mxu0 0.0
  %1328 = vmatpush1.msra.mxu0 0.0
  %1329 = vmatprep.subr.mxu0 0.0
  %1330 = vmatpush1.msra.mxu0 0.0
  %1331 = vmatprep.subr.mxu0 0.0
  %1332 = vmatpush1.msra.mxu0 0.0
  %1333 = vmatprep.subr.mxu0 0.0
  %1334 = vmatpush1.msra.mxu0 0.0
  %1335 = vmatprep.subr.mxu0 0.0
  %1336 = vmatpush1.msra.mxu0 0.0
  %1337 = vmatprep.subr.mxu0 0.0
  %1338 = vmatpush1.msra.mxu0 0.0
  %1339 = vmatprep.subr.mxu0 0.0
  %1340 = vmatpush1.msra.mxu0 0.0
  %1341 = vmatprep.subr.mxu0 0.0
  %1342 = vmatpush1.msra.mxu0 0.0
  %1343 = vmatprep.subr.mxu0 0.0
  %1344 = vmatpush1.msra.mxu0 0.0
  %1345 = vmatprep.subr.mxu0 0.0
  %1346 = vmatpush1.msra.mxu0 0.0
  %1347 = vmatprep.subr.mxu0 0.0
  %1348 = vmatpush1.msra.mxu0 0.0
  %1349 = vmatprep.subr.mxu0 0.0
  %1350 = vmatpush1.msra.mxu0 0.0
  %1351 = vmatprep.subr.mxu0 0.0
  %1352 = vmatpush1.msra.mxu0 0.0
  %1353 = vmatprep.subr.mxu0 0.0
  %1354 = vmatpush1.msra.mxu0 0.0
  %1355 = vmatprep.subr.mxu0 0.0
  %1356 = vmatpush1.msra.mxu0 0.0
  %1357 = vmatprep.subr.mxu0 0.0
  %1358 = vmatpush1.msra.mxu0 0.0
  %1359 = vmatprep.subr.mxu0 0.0
  %1360 = vmatpush1.msra.mxu0 0.0
  %1361 = vmatprep.subr.mxu0 0.0
  %1362 = vmatpush1.msra.mxu0 0.0
  %1363 = vmatprep.subr.mxu0 0.0
  %1364 = vmatpush1.msra.mxu0 0.0
  %1365 = vmatprep.mubr.f32.mxu0 0.0
  %1366 = vmatmul.mubr.f32.gmra.mrb[0].mxu0 %v1299
  %v1367 = vpop.f32.mrb[0].mxu0
  %v1368 = vadd.f32 0.0, %v1367
  %v1369 = vpop.f32.mrb[0].mxu0
  %1370 = vdwg.mxu0
  %v1371 = vadd.f32 %v605, %v1368
  %v1372 = vmul.f32 %v1371, 0.5
  %v1373 = vtanh.pop %v1372
  %v1374 = vadd.f32 %v1373, 1.0
  %v1375 = vmul.f32 %v1374, 0.5
  %v1376 = vtanh.pop %v1371
  %v1377 = vmul.f32 %v1375, %v1289
  %1379 = vrot.lane.b32.xlu0 %v1376, 64
  %v1380 = vpop.permute.xlu0 %1379
  %v1382 = vmul.f32 %v1375, %v1380
  %1384 = vrot.lane.b32.xlu0 %v1382, 32
  %v1385 = vpop.permute.xlu0 %1384
  %v1387 = vadd.f32 %v1377, %v1385
  %v1388 = vtanh.pop %v1387
  %1390 = vrot.lane.b32.xlu0 %v1388, 64
  %v1391 = vpop.permute.xlu0 %1390
  %v1393 = vmul.f32 %v1375, %v1391
  %v1394 = vld [vmem:[%s12] sm:$0xff]
  %v1395 = vld [vmem:[%s12 + $0x8] sm:$0xff]
  %v1396 = vld [vmem:[%s12 + $0x10] sm:$0xff]
  %v1397 = vld [vmem:[%s12 + $0x18] sm:$0xff]
  %v1398 = vld [vmem:[%s13] sm:$0x1]
  %v1400 = vlaneseq
  %v1401 = vshrl.u32 %v1400, 7
  %v1402 = vsub.s32 0, %v1401
  %v1403 = vrot.slane %v1398, %v1402
  %1406 = vrot.lane.b32.xlu0 %v1393, 32
  %v1407 = vpop.permute.xlu0 %1406
  %v1408 = vsel %vm478, %v1407, 0
  %1410 = vmatprep.subr.mxu0 0.0
  %1411 = vmatpush1.msra.mxu0 %v1394
  %1412 = vmatprep.subr.mxu0 0.0
  %1413 = vmatpush1.msra.mxu0 %v1395
  %1414 = vmatprep.subr.mxu0 0.0
  %1415 = vmatpush1.msra.mxu0 %v1396
  %1416 = vmatprep.subr.mxu0 0.0
  %1417 = vmatpush1.msra.mxu0 %v1397
  %1418 = vmatprep.subr.mxu0 0.0
  %1419 = vmatpush1.msra.mxu0 0.0
  %1420 = vmatprep.subr.mxu0 0.0
  %1421 = vmatpush1.msra.mxu0 0.0
  %1422 = vmatprep.subr.mxu0 0.0
  %1423 = vmatpush1.msra.mxu0 0.0
  %1424 = vmatprep.subr.mxu0 0.0
  %1425 = vmatpush1.msra.mxu0 0.0
  %1426 = vmatprep.subr.mxu0 0.0
  %1427 = vmatpush1.msra.mxu0 0.0
  %1428 = vmatprep.subr.mxu0 0.0
  %1429 = vmatpush1.msra.mxu0 0.0
  %1430 = vmatprep.subr.mxu0 0.0
  %1431 = vmatpush1.msra.mxu0 0.0
  %1432 = vmatprep.subr.mxu0 0.0
  %1433 = vmatpush1.msra.mxu0 0.0
  %1434 = vmatprep.subr.mxu0 0.0
  %1435 = vmatpush1.msra.mxu0 0.0
  %1436 = vmatprep.subr.mxu0 0.0
  %1437 = vmatpush1.msra.mxu0 0.0
  %1438 = vmatprep.subr.mxu0 0.0
  %1439 = vmatpush1.msra.mxu0 0.0
  %1440 = vmatprep.subr.mxu0 0.0
  %1441 = vmatpush1.msra.mxu0 0.0
  %1442 = vmatprep.subr.mxu0 0.0
  %1443 = vmatpush1.msra.mxu0 0.0
  %1444 = vmatprep.subr.mxu0 0.0
  %1445 = vmatpush1.msra.mxu0 0.0
  %1446 = vmatprep.subr.mxu0 0.0
  %1447 = vmatpush1.msra.mxu0 0.0
  %1448 = vmatprep.subr.mxu0 0.0
  %1449 = vmatpush1.msra.mxu0 0.0
  %1450 = vmatprep.subr.mxu0 0.0
  %1451 = vmatpush1.msra.mxu0 0.0
  %1452 = vmatprep.subr.mxu0 0.0
  %1453 = vmatpush1.msra.mxu0 0.0
  %1454 = vmatprep.subr.mxu0 0.0
  %1455 = vmatpush1.msra.mxu0 0.0
  %1456 = vmatprep.subr.mxu0 0.0
  %1457 = vmatpush1.msra.mxu0 0.0
  %1458 = vmatprep.subr.mxu0 0.0
  %1459 = vmatpush1.msra.mxu0 0.0
  %1460 = vmatprep.subr.mxu0 0.0
  %1461 = vmatpush1.msra.mxu0 0.0
  %1462 = vmatprep.subr.mxu0 0.0
  %1463 = vmatpush1.msra.mxu0 0.0
  %1464 = vmatprep.subr.mxu0 0.0
  %1465 = vmatpush1.msra.mxu0 0.0
  %1466 = vmatprep.subr.mxu0 0.0
  %1467 = vmatpush1.msra.mxu0 0.0
  %1468 = vmatprep.subr.mxu0 0.0
  %1469 = vmatpush1.msra.mxu0 0.0
  %1470 = vmatprep.subr.mxu0 0.0
  %1471 = vmatpush1.msra.mxu0 0.0
  %1472 = vmatprep.subr.mxu0 0.0
  %1473 = vmatpush1.msra.mxu0 0.0
  %1474 = vmatprep.mubr.f32.mxu0 0.0
  %1475 = vmatmul.mubr.f32.gmra.mrb[0].mxu0 %v711
  %v1476 = vpop.f32.mrb[0].mxu0
  %v1477 = vadd.f32 %v1403, %v1476
  %v1478 = vpop.f32.mrb[0].mxu0
  %1479 = vmatprep.mubr.f32.mxu0 0.0
  %1480 = vmatmul.mubr.f32.gmra.mrb[0].mxu0 %v809
  %v1481 = vpop.f32.mrb[0].mxu0
  %v1482 = vadd.f32 %v1403, %v1481
  %v1483 = vpop.f32.mrb[0].mxu0
  %1484 = vmatprep.mubr.f32.mxu0 0.0
  %1485 = vmatmul.mubr.f32.gmra.mrb[0].mxu0 %v907
  %v1486 = vpop.f32.mrb[0].mxu0
  %v1487 = vadd.f32 %v1403, %v1486
  %v1488 = vpop.f32.mrb[0].mxu0
  %1489 = vmatprep.mubr.f32.mxu0 0.0
  %1490 = vmatmul.mubr.f32.gmra.mrb[0].mxu0 %v1005
  %v1491 = vpop.f32.mrb[0].mxu0
  %v1492 = vadd.f32 %v1403, %v1491
  %v1493 = vpop.f32.mrb[0].mxu0
  %1494 = vmatprep.mubr.f32.mxu0 0.0
  %1495 = vmatmul.mubr.f32.gmra.mrb[0].mxu0 %v1103
  %v1496 = vpop.f32.mrb[0].mxu0
  %v1497 = vadd.f32 %v1403, %v1496
  %v1498 = vpop.f32.mrb[0].mxu0
  %1499 = vmatprep.mubr.f32.mxu0 0.0
  %1500 = vmatmul.mubr.f32.gmra.mrb[0].mxu0 %v1201
  %v1501 = vpop.f32.mrb[0].mxu0
  %v1502 = vadd.f32 %v1403, %v1501
  %v1503 = vpop.f32.mrb[0].mxu0
  %1504 = vmatprep.mubr.f32.mxu0 0.0
  %1505 = vmatmul.mubr.f32.gmra.mrb[0].mxu0 %v1299
  %v1506 = vpop.f32.mrb[0].mxu0
  %v1507 = vadd.f32 %v1403, %v1506
  %v1508 = vpop.f32.mrb[0].mxu0
  %1509 = vmatprep.mubr.f32.mxu0 0.0
  %1510 = vmatmul.mubr.f32.gmra.mrb[0].mxu0 %v1408
  %v1511 = vpop.f32.mrb[0].mxu0
  %v1512 = vadd.f32 %v1403, %v1511
  %v1513 = vpop.f32.mrb[0].mxu0
  %1514 = vdwg.mxu0
  %vm1515 = vcmask 15360
  %1516 = vst.msk [vmem:[%s14] sm:$0xff] %vm1515, %v1477
  %1517 = vst.msk [vmem:[%s14 + $0x8] sm:$0xff] %vm1515, %v1482
  %1518 = vst.msk [vmem:[%s14 + $0x10] sm:$0xff] %vm1515, %v1487
  %1519 = vst.msk [vmem:[%s14 + $0x18] sm:$0xff] %vm1515, %v1492
  %1520 = vst.msk [vmem:[%s14 + $0x20] sm:$0xff] %vm1515, %v1497
  %1521 = vst.msk [vmem:[%s14 + $0x28] sm:$0xff] %vm1515, %v1502
  %1522 = vst.msk [vmem:[%s14 + $0x30] sm:$0xff] %vm1515, %v1507
  %1523 = vst.msk [vmem:[%s14 + $0x38] sm:$0xff] %vm1515, %v1512
  // Predicated region
  $region58: #{cnn1d_lc_forward.1} parent=0 // pred_check
    _
  $region59: #{cnn1d_lc_forward.1} parent=0 // pred_check_branch
    %1525 = sbr.rel (0) target = $region61
  $region60: #{cnn1d_lc_forward.1} parent=0 // pred_region
    _
  $region61: #{cnn1d_lc_forward.1} parent=0 // pred_fallthru
    _
  // Predicated region
  $region62: #{cnn1d_lc_forward.1} parent=0 // pred_check
    _
  $region63: #{cnn1d_lc_forward.1} parent=0 // pred_check_branch
    %1527 = sbr.rel (0) target = $region65
  $region64: #{cnn1d_lc_forward.1} parent=0 // pred_region
    _
  $region65: #{cnn1d_lc_forward.1} parent=0 // pred_fallthru
    _

</llo_original>
